<compile_context>
chip_gen: v6e
topology: v6e:2x2x1
jax: 0.10.0
libtpu: 0.0.40
codegen_flags: <defaults>
</compile_context>

<pallas_src>
import functools
import math

import jax
import jax.numpy as jnp
from jax.experimental import pallas as pl
from jax.experimental.pallas import tpu as pltpu

NHEADS = 4
NUM_LAYERS = 2
LN_EPS = 1e-5
MASK_NEG = -1e30


def se_kernel(x_ref, mb_ref, hmask_ref,
              wqkv_ref, bqkv_ref,
              wo_ref, bo_ref,
              gamma_ref, beta_ref,
              o_ref,
              feat_ref):
    """One (batch-block bt, layer l) grid step.

    x_ref     : (1, M, E)      f32   folded-batch features (consumed at l==0), M=B_TILE*S
    mb_ref    : (1, M, M)      f32   block-diagonal additive key-padding bias
    hmask_ref : (H, 1, E)      f32   0/1 head-column masks (VMEM resident)
    wqkv_ref  : (L, E, 3E)     bf16  fused Wq|Wk|Wv, 1/sqrt(Dh) folded into Q cols
    bqkv_ref  : (L, 1, 3E)     f32
    wo_ref    : (L, E, E)      bf16
    bo_ref    : (L, 1, E)      f32
    gamma_ref : (L, 1, E)      f32
    beta_ref  : (L, 1, E)      f32
    o_ref     : (1, M, E)      f32   written at the last layer only
    feat_ref  : (M, E)         f32   VMEM carry of the features across layers
    """
    l = pl.program_id(1)
    num_layers = pl.num_programs(1)

    # Layer 0: seed the per-block feature carry from the HBM input.
    @pl.when(l == 0)
    def _():
        feat_ref[...] = x_ref[0]

    x = feat_ref[...]                                   # (M, E) f32
    M, E = x.shape
    H = NHEADS

    # ---- fused QKV in-projection over the whole slab (one MXU push) --------
    xb = x.astype(jnp.bfloat16)
    qkv = jnp.dot(xb, wqkv_ref[l],
                  preferred_element_type=jnp.float32) + bqkv_ref[l]   # (M, 3E)
    q = qkv[:, 0 * E:1 * E]          # already scaled by 1/sqrt(Dh) (folded)
    k = qkv[:, 1 * E:2 * E]
    v = qkv[:, 2 * E:3 * E]
    qb = q.astype(jnp.bfloat16)

    mask = mb_ref[0]                 # (M, M) block-diag bias, loaded once

    # ---- per-head attention: head split via 0/1 column masks (VALU only), --
    # ---- block-diagonal scores over the folded batch (MXU)             -----
    ctx = jnp.zeros((M, E), jnp.float32)
    for h in range(H):
        hm = hmask_ref[h]                                # (1, E) free view
        kh = (k * hm).astype(jnp.bfloat16)               # zeros outside head h
        vh = (v * hm).astype(jnp.bfloat16)
        # q @ k_h^T: masked-out columns contribute 0 -> exact per-head scores.
        s_h = jax.lax.dot_general(qb, kh, (((1,), (1,)), ((), ())),
                                  preferred_element_type=jnp.float32)  # (M, M)
        s_h = s_h + mask
        m_h = jnp.max(s_h, axis=-1, keepdims=True)
        p_h = jnp.exp(s_h - m_h)
        inv = pl.reciprocal(jnp.sum(p_h, axis=-1, keepdims=True), approx=True)
        a_h = (p_h * inv).astype(jnp.bfloat16)           # softmax; cross-batch = 0
        # Context lands in head h's own column block -> head concat folds away.
        ctx = ctx + jnp.dot(a_h, vh, preferred_element_type=jnp.float32)

    # ---- out-projection over the whole slab (one MXU push, no Wo slicing) --
    att = jnp.dot(ctx.astype(jnp.bfloat16), wo_ref[l],
                  preferred_element_type=jnp.float32) + bo_ref[l]

    # dropout(p=0.2) -> identity in eval mode.
    # TODO(synk): training-mode dropout not implemented.

    # ---- residual + LayerNorm (f32, matches torch) --------------------------
    y = x + att
    mu = jnp.mean(y, axis=-1, keepdims=True)
    d = y - mu
    var = jnp.mean(d * d, axis=-1, keepdims=True)
    out = d * jax.lax.rsqrt(var + LN_EPS) * gamma_ref[l] + beta_ref[l]

    feat_ref[...] = out

    @pl.when(l == num_layers - 1)
    def _():
        o_ref[0] = out


@functools.partial(jax.jit, static_argnames=("b_tile",))
def se_forward(features_src, key_padding_mask, kparams, *, b_tile=None):
    """features_src: (S, B, E) f32; key_padding_mask: (S, B) bool (True = pad).

    kparams: stacked, kernel-ready per-layer params (see prepare_kernel_params).
    Returns (S, B, E) f32 -- the SE forward pass in eval mode.
    """
    S, B, E = features_src.shape
    L = kparams["wqkv"].shape[0]
    H = NHEADS
    Dh = E // H

    if b_tile is None:
        b_tile = B // 2 if (B >= 2 and B % 2 == 0) else 1
    assert B % b_tile == 0, "batch must be divisible by b_tile"
    nb = B // b_tile
    M = b_tile * S

    # Fold the batch into the row (sublane) dimension outside the kernel.
    x_slab = jnp.transpose(features_src, (1, 0, 2)).astype(jnp.float32)  # (B,S,E)
    x_slab = x_slab.reshape(nb, M, E)

    # Block-diagonal additive key-padding bias, one (M, M) slab per batch block:
    # diag blocks carry the per-batch padding bias; off-diag blocks are -1e30 so
    # folded batches never attend to each other (softmax weight exactly 0).
    kpm_bs = jnp.transpose(key_padding_mask, (1, 0))                     # (B, S)
    bias = jnp.where(kpm_bs, jnp.float32(MASK_NEG), jnp.float32(0.0))
    bias_blk = bias.reshape(nb, b_tile, S)
    eye = jnp.eye(b_tile, dtype=jnp.float32)
    mask5 = jnp.where(eye[None, :, None, :, None] > 0,
                      bias_blk[:, None, None, :, :],
                      jnp.float32(MASK_NEG))          # (nb, BT, 1, BT, S)
    mask_bd = jnp.broadcast_to(mask5, (nb, b_tile, S, b_tile, S)).reshape(nb, M, M)

    # 0/1 head-column masks: head h owns lanes [h*Dh, (h+1)*Dh).
    head_mask = (jnp.arange(E)[None, :] // Dh ==
                 jnp.arange(H)[:, None]).astype(jnp.float32)[:, None, :]  # (H,1,E)

    batch_map = lambda bt, l: (bt, 0, 0)
    const_map = lambda bt, l: (0, 0, 0)    # whole-array, VMEM-resident block

    cost = pl.CostEstimate(
        flops=2 * B * L * (S * E * 3 * E + 2 * H * S * S * Dh + S * E * E),
        transcendentals=B * L * H * S * S,
        bytes_accessed=(2 * B * S * E * 4 + nb * M * M * 4
                        + L * (E * 3 * E + E * E) * 2
                        + L * 6 * E * 4 + H * E * 4),
    )

    out = pl.pallas_call(
        se_kernel,
        out_shape=jax.ShapeDtypeStruct((nb, M, E), jnp.float32),
        grid_spec=pltpu.PrefetchScalarGridSpec(
            num_scalar_prefetch=0,
            grid=(nb, L),                                   # layers innermost
            in_specs=[
                pl.BlockSpec((1, M, E), batch_map),         # folded features
                pl.BlockSpec((1, M, M), batch_map),         # block-diag mask bias
                pl.BlockSpec((H, 1, E), const_map),         # head column masks
                pl.BlockSpec((L, E, 3 * E), const_map),     # fused Wqkv (bf16), resident
                pl.BlockSpec((L, 1, 3 * E), const_map),     # fused bqkv, resident
                pl.BlockSpec((L, E, E), const_map),         # Wo (bf16), resident
                pl.BlockSpec((L, 1, E), const_map),         # bo, resident
                pl.BlockSpec((L, 1, E), const_map),         # LN gamma, resident
                pl.BlockSpec((L, 1, E), const_map),         # LN beta, resident
            ],
            out_specs=pl.BlockSpec((1, M, E), batch_map),
            scratch_shapes=[pltpu.VMEM((M, E), jnp.float32)],
        ),
        compiler_params=pltpu.CompilerParams(
            dimension_semantics=("parallel", "arbitrary")),
        cost_estimate=cost,
    )(x_slab, mask_bd, head_mask,
      kparams["wqkv"], kparams["bqkv"],
      kparams["wo"], kparams["bo"],
      kparams["gamma"], kparams["beta"])

    out = out.reshape(B, S, E)
    return jnp.transpose(out, (1, 0, 2))                    # back to (S, B, E)


def init_layer_params(key, E):
    """Torch-style params for one layer; weights stored pre-transposed (W.T)
    so the math is x @ W + b. Biases/LN perturbed so every path is exercised."""
    ks = jax.random.split(key, 10)
    s = 1.0 / math.sqrt(E)
    u = lambda k, shape, lo, hi: jax.random.uniform(k, shape, jnp.float32, lo, hi)
    return dict(
        wq=u(ks[0], (E, E), -s, s),
        wk=u(ks[1], (E, E), -s, s),
        wv=u(ks[2], (E, E), -s, s),
        bq=u(ks[3], (1, E), -0.1, 0.1),
        bk=u(ks[4], (1, E), -0.1, 0.1),
        bv=u(ks[5], (1, E), -0.1, 0.1),
        wo=u(ks[6], (E, E), -s, s),
        bo=u(ks[7], (1, E), -0.1, 0.1),
        gamma=1.0 + u(ks[8], (1, E), -0.1, 0.1),
        beta=u(ks[9], (1, E), -0.1, 0.1),
    )


def init_params(key, E, num_layers):
    keys = jax.random.split(key, num_layers)
    return [init_layer_params(k, E) for k in keys]


def prepare_kernel_params(layer_params, nheads=NHEADS):
    """Stack per-layer params, fuse QKV, fold 1/sqrt(Dh) into the Q columns,
    and cast MXU weight operands to bf16 (f32 accumulation happens in-kernel).
    Wo stays fused: the kernel's masked-column context accumulation removes any
    need for per-head Wo slicing."""
    E = layer_params[0]["wq"].shape[0]
    scale = 1.0 / math.sqrt(E // nheads)
    wqkv, bqkv, wo, bo, gamma, beta = [], [], [], [], [], []
    for p in layer_params:
        wqkv.append(jnp.concatenate([p["wq"] * scale, p["wk"], p["wv"]], axis=1))
        bqkv.append(jnp.concatenate([p["bq"] * scale, p["bk"], p["bv"]], axis=1))
        wo.append(p["wo"])
        bo.append(p["bo"])
        gamma.append(p["gamma"])
        beta.append(p["beta"])
    return dict(
        wqkv=jnp.stack(wqkv).astype(jnp.bfloat16),   # (L, E, 3E)
        bqkv=jnp.stack(bqkv),                        # (L, 1, 3E) f32
        wo=jnp.stack(wo).astype(jnp.bfloat16),       # (L, E, E)
        bo=jnp.stack(bo),                            # (L, 1, E)  f32
        gamma=jnp.stack(gamma),                      # (L, 1, E)  f32
        beta=jnp.stack(beta),                        # (L, 1, E)  f32
    )


# ---------------------- pure-JAX f32 reference (torch semantics) -------------
def te_layer_ref(x_bse, kpm_bs, p):
    B, S, E = x_bse.shape
    H, Dh = NHEADS, E // NHEADS
    q = x_bse @ p["wq"] + p["bq"]
    k = x_bse @ p["wk"] + p["bk"]
    v = x_bse @ p["wv"] + p["bv"]
    qh = q.reshape(B, S, H, Dh)
    kh = k.reshape(B, S, H, Dh)
    vh = v.reshape(B, S, H, Dh)
    sc = jnp.einsum('bshd,bthd->bhst', qh, kh) / math.sqrt(Dh)
    sc = jnp.where(kpm_bs[:, None, None, :], MASK_NEG, sc)
    attn = jax.nn.softmax(sc, axis=-1)
    ctx = jnp.einsum('bhst,bthd->bshd', attn, vh).reshape(B, S, E)
    out = ctx @ p["wo"] + p["bo"]
    y = x_bse + out
    mu = jnp.mean(y, axis=-1, keepdims=True)
    var = jnp.mean((y - mu) ** 2, axis=-1, keepdims=True)
    return (y - mu) / jnp.sqrt(var + LN_EPS) * p["gamma"] + p["beta"]


def se_ref(features_src, key_padding_mask, layer_params):
    x = jnp.transpose(features_src, (1, 0, 2))             # (B, S, E)
    kpm = jnp.transpose(key_padding_mask, (1, 0))           # (B, S)
    for p in layer_params:
        x = te_layer_ref(x, kpm, p)
    return jnp.transpose(x, (1, 0, 2))                      # (S, B, E)


if __name__ == "__main__":
    S, B, E = 8, 8, 32     # seq, batch, feature_size (nheads=4 -> head_dim=8)
    L = NUM_LAYERS

    key = jax.random.PRNGKey(0)
    k_x, k_p = jax.random.split(key)
    features_src = jax.random.normal(k_x, (S, B, E), jnp.float32)

    # SE.forward receives seq_lengths; build the boolean key_padding_mask from it.
    seq_lengths = jnp.array([6, 8, 5, 8, 3, 7, 8, 4], dtype=jnp.int32)
    key_padding_mask = jnp.arange(S)[:, None] >= seq_lengths[None, :]   # (S, B)

    layer_params = init_params(k_p, E, L)
    kparams = prepare_kernel_params(layer_params)

    # b_tile=4 -> grid (2, L): 2 parallel batch blocks (keeps both v7x cores busy)
    # while each step runs 32-row (B_TILE*S) slab matmuls.
    out = se_forward(features_src, key_padding_mask, kparams, b_tile=4)
    out = jax.block_until_ready(out)

    ref = se_ref(features_src, key_padding_mask, layer_params)
    assert out.shape == (S, B, E)
    max_err = float(jnp.max(jnp.abs(out - ref)))
    # Tolerance accounts for bf16 matmul operands (incl. attention matmuls) and
    # the approximate-reciprocal softmax denominator; accumulation stays f32.
    assert jnp.allclose(out, ref, atol=4e-2, rtol=4e-2), (
        "mismatch vs reference; max abs err = %g" % max_err)

    print("KERNEL_OK")
</pallas_src>

<mosaic_0001>
module attributes {stable_mosaic.version = 11 : i64} {
  func.func @se_kernel(%arg0: i32, %arg1: i32, %arg2: memref<1x32x32xf32, #tpu.memory_space<vmem>>, %arg3: memref<1x32x32xf32, #tpu.memory_space<vmem>>, %arg4: memref<4x1x32xf32, #tpu.memory_space<vmem>>, %arg5: memref<2x32x96xbf16, #tpu.memory_space<vmem>>, %arg6: memref<2x1x96xf32, #tpu.memory_space<vmem>>, %arg7: memref<2x32x32xbf16, #tpu.memory_space<vmem>>, %arg8: memref<2x1x32xf32, #tpu.memory_space<vmem>>, %arg9: memref<2x1x32xf32, #tpu.memory_space<vmem>>, %arg10: memref<2x1x32xf32, #tpu.memory_space<vmem>>, %arg11: memref<1x32x32xf32, #tpu.memory_space<vmem>>, %arg12: memref<32x32xf32, #tpu.memory_space<vmem>>) attributes {dimension_semantics = [#tpu.dimension_semantics<parallel>, #tpu.dimension_semantics<arbitrary>], iteration_bounds = array<i64: 2, 2>, scalar_prefetch = 0 : i64, scratch_operands = 1 : i64, tpu.core_type = #tpu.core_type<tc>, window_params = [{transform_indices = @transform_0, window_bounds = array<i64: 1, 32, 32>}, {transform_indices = @transform_1, window_bounds = array<i64: 1, 32, 32>}, {pipeline_mode = #tpu.pipeline_mode<synchronous>, transform_indices = @transform_2, window_bounds = array<i64: 4, 1, 32>}, {pipeline_mode = #tpu.pipeline_mode<synchronous>, transform_indices = @transform_3, window_bounds = array<i64: 2, 32, 96>}, {pipeline_mode = #tpu.pipeline_mode<synchronous>, transform_indices = @transform_4, window_bounds = array<i64: 2, 1, 96>}, {pipeline_mode = #tpu.pipeline_mode<synchronous>, transform_indices = @transform_5, window_bounds = array<i64: 2, 32, 32>}, {pipeline_mode = #tpu.pipeline_mode<synchronous>, transform_indices = @transform_6, window_bounds = array<i64: 2, 1, 32>}, {pipeline_mode = #tpu.pipeline_mode<synchronous>, transform_indices = @transform_7, window_bounds = array<i64: 2, 1, 32>}, {pipeline_mode = #tpu.pipeline_mode<synchronous>, transform_indices = @transform_8, window_bounds = array<i64: 2, 1, 32>}, {transform_indices = @transform_9, window_bounds = array<i64: 1, 32, 32>}]} {
    %c0_i32 = arith.constant 0 : i32
    %0 = arith.cmpi eq, %arg1, %c0_i32 : i32
    %1 = arith.extui %0 : i1 to i32
    %c0_i32_0 = arith.constant 0 : i32
    %2 = arith.cmpi ne, %1, %c0_i32_0 : i32
    scf.if %2 {
      %c0_52 = arith.constant 0 : index
      %c0_53 = arith.constant 0 : index
      %c0_54 = arith.constant 0 : index
      %154 = vector.load %arg2[%c0_52, %c0_53, %c0_54] : memref<1x32x32xf32, #tpu.memory_space<vmem>>, vector<1x32x32xf32>
      %155 = vector.shape_cast %154 : vector<1x32x32xf32> to vector<32x32xf32>
      %c0_55 = arith.constant 0 : index
      %c0_56 = arith.constant 0 : index
      %156 = vector.load %arg12[%c0_55, %c0_56] : memref<32x32xf32, #tpu.memory_space<vmem>>, vector<32x32xf32>
      tpu.vector_store %arg12[%c0_55, %c0_56], %155 {strides = array<i32>} : memref<32x32xf32, #tpu.memory_space<vmem>>, vector<32x32xf32>,
    } else {
    }
    %c0 = arith.constant 0 : index
    %c0_1 = arith.constant 0 : index
    %3 = vector.load %arg12[%c0, %c0_1] : memref<32x32xf32, #tpu.memory_space<vmem>>, vector<32x32xf32>
    %4 = arith.truncf %3 : vector<32x32xf32> to vector<32x32xbf16>
    %5 = arith.index_cast %arg1 : i32 to index
    %c0_2 = arith.constant 0 : index
    %c0_3 = arith.constant 0 : index
    %6 = vector.load %arg5[%5, %c0_2, %c0_3] : memref<2x32x96xbf16, #tpu.memory_space<vmem>>, vector<1x32x96xbf16>
    %7 = vector.shape_cast %6 : vector<1x32x96xbf16> to vector<32x96xbf16>
    %cst = arith.constant dense<0.000000e+00> : vector<32x96xf32>
    %8 = tpu.matmul %4, %7, %cst {dimension_numbers = #tpu.dot_dimension_numbers<[1], [0], [0], [1], [0, 0, 1, 1], [], []>} : vector<32x32xbf16>, vector<32x96xbf16>, vector<32x96xf32> -> vector<32x96xf32>
    %9 = arith.index_cast %arg1 : i32 to index
    %c0_4 = arith.constant 0 : index
    %c0_5 = arith.constant 0 : index
    %10 = vector.load %arg6[%9, %c0_4, %c0_5] : memref<2x1x96xf32, #tpu.memory_space<vmem>>, vector<1x1x96xf32>
    %11 = vector.shape_cast %10 : vector<1x1x96xf32> to vector<1x96xf32>
    %12 = vector.broadcast %11 : vector<1x96xf32> to vector<32x96xf32>
    %13 = arith.addf %8, %12 : vector<32x96xf32>
    %14 = vector.extract_strided_slice %13 {offsets = [0, 0], sizes = [32, 32], strides = [1, 1]} : vector<32x96xf32> to vector<32x32xf32>
    %15 = vector.extract_strided_slice %13 {offsets = [0, 32], sizes = [32, 32], strides = [1, 1]} : vector<32x96xf32> to vector<32x32xf32>
    %16 = vector.extract_strided_slice %13 {offsets = [0, 64], sizes = [32, 32], strides = [1, 1]} : vector<32x96xf32> to vector<32x32xf32>
    %17 = arith.truncf %14 : vector<32x32xf32> to vector<32x32xbf16>
    %c0_6 = arith.constant 0 : index
    %c0_7 = arith.constant 0 : index
    %c0_8 = arith.constant 0 : index
    %18 = vector.load %arg3[%c0_6, %c0_7, %c0_8] : memref<1x32x32xf32, #tpu.memory_space<vmem>>, vector<1x32x32xf32>
    %19 = vector.shape_cast %18 : vector<1x32x32xf32> to vector<32x32xf32>
    %cst_9 = arith.constant 0.000000e+00 : f32
    %20 = vector.broadcast %cst_9 : f32 to vector<32x32xf32>
    %c0_10 = arith.constant 0 : index
    %c0_11 = arith.constant 0 : index
    %c0_12 = arith.constant 0 : index
    %21 = vector.load %arg4[%c0_10, %c0_11, %c0_12] : memref<4x1x32xf32, #tpu.memory_space<vmem>>, vector<1x1x32xf32>
    %22 = vector.shape_cast %21 : vector<1x1x32xf32> to vector<1x32xf32>
    %23 = vector.broadcast %22 : vector<1x32xf32> to vector<32x32xf32>
    %24 = arith.mulf %15, %23 : vector<32x32xf32>
    %25 = arith.truncf %24 : vector<32x32xf32> to vector<32x32xbf16>
    %26 = vector.broadcast %22 : vector<1x32xf32> to vector<32x32xf32>
    %27 = arith.mulf %16, %26 : vector<32x32xf32>
    %28 = arith.truncf %27 : vector<32x32xf32> to vector<32x32xbf16>
    %cst_13 = arith.constant dense<0.000000e+00> : vector<32x32xf32>
    %29 = tpu.matmul %17, %25, %cst_13 {dimension_numbers = #tpu.dot_dimension_numbers<[1], [1], [0], [0], [0, 0, 1, 0], [], []>} : vector<32x32xbf16>, vector<32x32xbf16>, vector<32x32xf32> -> vector<32x32xf32>
    %30 = arith.addf %29, %19 : vector<32x32xf32>
    %cst_14 = arith.constant dense<0xFF800000> : vector<32xf32>
    %31 = vector.multi_reduction <maximumf>, %30, %cst_14 [1] : vector<32x32xf32> to vector<32xf32>
    %32 = vector.shape_cast %31 : vector<32xf32> to vector<32x1xf32>
    %33 = vector.broadcast %32 : vector<32x1xf32> to vector<32x32xf32>
    %34 = arith.subf %30, %33 : vector<32x32xf32>
    %35 = math.exp %34 : vector<32x32xf32>
    %cst_15 = arith.constant dense<0.000000e+00> : vector<32xf32>
    %36 = vector.multi_reduction <add>, %35, %cst_15 [1] : vector<32x32xf32> to vector<32xf32>
    %37 = vector.shape_cast %36 : vector<32xf32> to vector<32x1xf32>
    %38 = tpu.reciprocal %37 {approx = true} : vector<32x1xf32> -> vector<32x1xf32>
    %39 = vector.broadcast %38 : vector<32x1xf32> to vector<32x32xf32>
    %40 = arith.mulf %35, %39 : vector<32x32xf32>
    %41 = arith.truncf %40 : vector<32x32xf32> to vector<32x32xbf16>
    %cst_16 = arith.constant dense<0.000000e+00> : vector<32x32xf32>
    %42 = tpu.matmul %41, %28, %cst_16 {dimension_numbers = #tpu.dot_dimension_numbers<[1], [0], [0], [1], [0, 0, 1, 1], [], []>} : vector<32x32xbf16>, vector<32x32xbf16>, vector<32x32xf32> -> vector<32x32xf32>
    %43 = arith.addf %20, %42 : vector<32x32xf32>
    %c1 = arith.constant 1 : index
    %c0_17 = arith.constant 0 : index
    %c0_18 = arith.constant 0 : index
    %44 = vector.load %arg4[%c1, %c0_17, %c0_18] : memref<4x1x32xf32, #tpu.memory_space<vmem>>, vector<1x1x32xf32>
    %45 = vector.shape_cast %44 : vector<1x1x32xf32> to vector<1x32xf32>
    %46 = vector.broadcast %45 : vector<1x32xf32> to vector<32x32xf32>
    %47 = arith.mulf %15, %46 : vector<32x32xf32>
    %48 = arith.truncf %47 : vector<32x32xf32> to vector<32x32xbf16>
    %49 = vector.broadcast %45 : vector<1x32xf32> to vector<32x32xf32>
    %50 = arith.mulf %16, %49 : vector<32x32xf32>
    %51 = arith.truncf %50 : vector<32x32xf32> to vector<32x32xbf16>
    %cst_19 = arith.constant dense<0.000000e+00> : vector<32x32xf32>
    %52 = tpu.matmul %17, %48, %cst_19 {dimension_numbers = #tpu.dot_dimension_numbers<[1], [1], [0], [0], [0, 0, 1, 0], [], []>} : vector<32x32xbf16>, vector<32x32xbf16>, vector<32x32xf32> -> vector<32x32xf32>
    %53 = arith.addf %52, %19 : vector<32x32xf32>
    %cst_20 = arith.constant dense<0xFF800000> : vector<32xf32>
    %54 = vector.multi_reduction <maximumf>, %53, %cst_20 [1] : vector<32x32xf32> to vector<32xf32>
    %55 = vector.shape_cast %54 : vector<32xf32> to vector<32x1xf32>
    %56 = vector.broadcast %55 : vector<32x1xf32> to vector<32x32xf32>
    %57 = arith.subf %53, %56 : vector<32x32xf32>
    %58 = math.exp %57 : vector<32x32xf32>
    %cst_21 = arith.constant dense<0.000000e+00> : vector<32xf32>
    %59 = vector.multi_reduction <add>, %58, %cst_21 [1] : vector<32x32xf32> to vector<32xf32>
    %60 = vector.shape_cast %59 : vector<32xf32> to vector<32x1xf32>
    %61 = tpu.reciprocal %60 {approx = true} : vector<32x1xf32> -> vector<32x1xf32>
    %62 = vector.broadcast %61 : vector<32x1xf32> to vector<32x32xf32>
    %63 = arith.mulf %58, %62 : vector<32x32xf32>
    %64 = arith.truncf %63 : vector<32x32xf32> to vector<32x32xbf16>
    %cst_22 = arith.constant dense<0.000000e+00> : vector<32x32xf32>
    %65 = tpu.matmul %64, %51, %cst_22 {dimension_numbers = #tpu.dot_dimension_numbers<[1], [0], [0], [1], [0, 0, 1, 1], [], []>} : vector<32x32xbf16>, vector<32x32xbf16>, vector<32x32xf32> -> vector<32x32xf32>
    %66 = arith.addf %43, %65 : vector<32x32xf32>
    %c2 = arith.constant 2 : index
    %c0_23 = arith.constant 0 : index
    %c0_24 = arith.constant 0 : index
    %67 = vector.load %arg4[%c2, %c0_23, %c0_24] : memref<4x1x32xf32, #tpu.memory_space<vmem>>, vector<1x1x32xf32>
    %68 = vector.shape_cast %67 : vector<1x1x32xf32> to vector<1x32xf32>
    %69 = vector.broadcast %68 : vector<1x32xf32> to vector<32x32xf32>
    %70 = arith.mulf %15, %69 : vector<32x32xf32>
    %71 = arith.truncf %70 : vector<32x32xf32> to vector<32x32xbf16>
    %72 = vector.broadcast %68 : vector<1x32xf32> to vector<32x32xf32>
    %73 = arith.mulf %16, %72 : vector<32x32xf32>
    %74 = arith.truncf %73 : vector<32x32xf32> to vector<32x32xbf16>
    %cst_25 = arith.constant dense<0.000000e+00> : vector<32x32xf32>
    %75 = tpu.matmul %17, %71, %cst_25 {dimension_numbers = #tpu.dot_dimension_numbers<[1], [1], [0], [0], [0, 0, 1, 0], [], []>} : vector<32x32xbf16>, vector<32x32xbf16>, vector<32x32xf32> -> vector<32x32xf32>
    %76 = arith.addf %75, %19 : vector<32x32xf32>
    %cst_26 = arith.constant dense<0xFF800000> : vector<32xf32>
    %77 = vector.multi_reduction <maximumf>, %76, %cst_26 [1] : vector<32x32xf32> to vector<32xf32>
    %78 = vector.shape_cast %77 : vector<32xf32> to vector<32x1xf32>
    %79 = vector.broadcast %78 : vector<32x1xf32> to vector<32x32xf32>
    %80 = arith.subf %76, %79 : vector<32x32xf32>
    %81 = math.exp %80 : vector<32x32xf32>
    %cst_27 = arith.constant dense<0.000000e+00> : vector<32xf32>
    %82 = vector.multi_reduction <add>, %81, %cst_27 [1] : vector<32x32xf32> to vector<32xf32>
    %83 = vector.shape_cast %82 : vector<32xf32> to vector<32x1xf32>
    %84 = tpu.reciprocal %83 {approx = true} : vector<32x1xf32> -> vector<32x1xf32>
    %85 = vector.broadcast %84 : vector<32x1xf32> to vector<32x32xf32>
    %86 = arith.mulf %81, %85 : vector<32x32xf32>
    %87 = arith.truncf %86 : vector<32x32xf32> to vector<32x32xbf16>
    %cst_28 = arith.constant dense<0.000000e+00> : vector<32x32xf32>
    %88 = tpu.matmul %87, %74, %cst_28 {dimension_numbers = #tpu.dot_dimension_numbers<[1], [0], [0], [1], [0, 0, 1, 1], [], []>} : vector<32x32xbf16>, vector<32x32xbf16>, vector<32x32xf32> -> vector<32x32xf32>
    %89 = arith.addf %66, %88 : vector<32x32xf32>
    %c3 = arith.constant 3 : index
    %c0_29 = arith.constant 0 : index
    %c0_30 = arith.constant 0 : index
    %90 = vector.load %arg4[%c3, %c0_29, %c0_30] : memref<4x1x32xf32, #tpu.memory_space<vmem>>, vector<1x1x32xf32>
    %91 = vector.shape_cast %90 : vector<1x1x32xf32> to vector<1x32xf32>
    %92 = vector.broadcast %91 : vector<1x32xf32> to vector<32x32xf32>
    %93 = arith.mulf %15, %92 : vector<32x32xf32>
    %94 = arith.truncf %93 : vector<32x32xf32> to vector<32x32xbf16>
    %95 = vector.broadcast %91 : vector<1x32xf32> to vector<32x32xf32>
    %96 = arith.mulf %16, %95 : vector<32x32xf32>
    %97 = arith.truncf %96 : vector<32x32xf32> to vector<32x32xbf16>
    %cst_31 = arith.constant dense<0.000000e+00> : vector<32x32xf32>
    %98 = tpu.matmul %17, %94, %cst_31 {dimension_numbers = #tpu.dot_dimension_numbers<[1], [1], [0], [0], [0, 0, 1, 0], [], []>} : vector<32x32xbf16>, vector<32x32xbf16>, vector<32x32xf32> -> vector<32x32xf32>
    %99 = arith.addf %98, %19 : vector<32x32xf32>
    %cst_32 = arith.constant dense<0xFF800000> : vector<32xf32>
    %100 = vector.multi_reduction <maximumf>, %99, %cst_32 [1] : vector<32x32xf32> to vector<32xf32>
    %101 = vector.shape_cast %100 : vector<32xf32> to vector<32x1xf32>
    %102 = vector.broadcast %101 : vector<32x1xf32> to vector<32x32xf32>
    %103 = arith.subf %99, %102 : vector<32x32xf32>
    %104 = math.exp %103 : vector<32x32xf32>
    %cst_33 = arith.constant dense<0.000000e+00> : vector<32xf32>
    %105 = vector.multi_reduction <add>, %104, %cst_33 [1] : vector<32x32xf32> to vector<32xf32>
    %106 = vector.shape_cast %105 : vector<32xf32> to vector<32x1xf32>
    %107 = tpu.reciprocal %106 {approx = true} : vector<32x1xf32> -> vector<32x1xf32>
    %108 = vector.broadcast %107 : vector<32x1xf32> to vector<32x32xf32>
    %109 = arith.mulf %104, %108 : vector<32x32xf32>
    %110 = arith.truncf %109 : vector<32x32xf32> to vector<32x32xbf16>
    %cst_34 = arith.constant dense<0.000000e+00> : vector<32x32xf32>
    %111 = tpu.matmul %110, %97, %cst_34 {dimension_numbers = #tpu.dot_dimension_numbers<[1], [0], [0], [1], [0, 0, 1, 1], [], []>} : vector<32x32xbf16>, vector<32x32xbf16>, vector<32x32xf32> -> vector<32x32xf32>
    %112 = arith.addf %89, %111 : vector<32x32xf32>
    %113 = arith.truncf %112 : vector<32x32xf32> to vector<32x32xbf16>
    %114 = arith.index_cast %arg1 : i32 to index
    %c0_35 = arith.constant 0 : index
    %c0_36 = arith.constant 0 : index
    %115 = vector.load %arg7[%114, %c0_35, %c0_36] : memref<2x32x32xbf16, #tpu.memory_space<vmem>>, vector<1x32x32xbf16>
    %116 = vector.shape_cast %115 : vector<1x32x32xbf16> to vector<32x32xbf16>
    %cst_37 = arith.constant dense<0.000000e+00> : vector<32x32xf32>
    %117 = tpu.matmul %113, %116, %cst_37 {dimension_numbers = #tpu.dot_dimension_numbers<[1], [0], [0], [1], [0, 0, 1, 1], [], []>} : vector<32x32xbf16>, vector<32x32xbf16>, vector<32x32xf32> -> vector<32x32xf32>
    %118 = arith.index_cast %arg1 : i32 to index
    %c0_38 = arith.constant 0 : index
    %c0_39 = arith.constant 0 : index
    %119 = vector.load %arg8[%118, %c0_38, %c0_39] : memref<2x1x32xf32, #tpu.memory_space<vmem>>, vector<1x1x32xf32>
    %120 = vector.shape_cast %119 : vector<1x1x32xf32> to vector<1x32xf32>
    %121 = vector.broadcast %120 : vector<1x32xf32> to vector<32x32xf32>
    %122 = arith.addf %117, %121 : vector<32x32xf32>
    %123 = arith.addf %3, %122 : vector<32x32xf32>
    %cst_40 = arith.constant dense<0.000000e+00> : vector<32xf32>
    %124 = vector.multi_reduction <add>, %123, %cst_40 [1] : vector<32x32xf32> to vector<32xf32>
    %125 = vector.shape_cast %124 : vector<32xf32> to vector<32x1xf32>
    %cst_41 = arith.constant 3.200000e+01 : f32
    %126 = vector.broadcast %cst_41 : f32 to vector<32x1xf32>
    %127 = arith.divf %125, %126 : vector<32x1xf32>
    %128 = vector.broadcast %127 : vector<32x1xf32> to vector<32x32xf32>
    %129 = arith.subf %123, %128 : vector<32x32xf32>
    %130 = arith.mulf %129, %129 : vector<32x32xf32>
    %cst_42 = arith.constant dense<0.000000e+00> : vector<32xf32>
    %131 = vector.multi_reduction <add>, %130, %cst_42 [1] : vector<32x32xf32> to vector<32xf32>
    %132 = vector.shape_cast %131 : vector<32xf32> to vector<32x1xf32>
    %cst_43 = arith.constant 3.200000e+01 : f32
    %133 = vector.broadcast %cst_43 : f32 to vector<32x1xf32>
    %134 = arith.divf %132, %133 : vector<32x1xf32>
    %cst_44 = arith.constant 9.99999974E-6 : f32
    %135 = vector.broadcast %cst_44 : f32 to vector<32x1xf32>
    %136 = arith.addf %134, %135 : vector<32x1xf32>
    %137 = math.rsqrt %136 : vector<32x1xf32>
    %138 = vector.broadcast %137 : vector<32x1xf32> to vector<32x32xf32>
    %139 = arith.mulf %129, %138 : vector<32x32xf32>
    %140 = arith.index_cast %arg1 : i32 to index
    %c0_45 = arith.constant 0 : index
    %c0_46 = arith.constant 0 : index
    %141 = vector.load %arg9[%140, %c0_45, %c0_46] : memref<2x1x32xf32, #tpu.memory_space<vmem>>, vector<1x1x32xf32>
    %142 = vector.shape_cast %141 : vector<1x1x32xf32> to vector<1x32xf32>
    %143 = vector.broadcast %142 : vector<1x32xf32> to vector<32x32xf32>
    %144 = arith.mulf %139, %143 : vector<32x32xf32>
    %145 = arith.index_cast %arg1 : i32 to index
    %c0_47 = arith.constant 0 : index
    %c0_48 = arith.constant 0 : index
    %146 = vector.load %arg10[%145, %c0_47, %c0_48] : memref<2x1x32xf32, #tpu.memory_space<vmem>>, vector<1x1x32xf32>
    %147 = vector.shape_cast %146 : vector<1x1x32xf32> to vector<1x32xf32>
    %148 = vector.broadcast %147 : vector<1x32xf32> to vector<32x32xf32>
    %149 = arith.addf %144, %148 : vector<32x32xf32>
    %c0_49 = arith.constant 0 : index
    %c0_50 = arith.constant 0 : index
    %150 = vector.load %arg12[%c0_49, %c0_50] : memref<32x32xf32, #tpu.memory_space<vmem>>, vector<32x32xf32>
    tpu.vector_store %arg12[%c0_49, %c0_50], %149 {strides = array<i32>} : memref<32x32xf32, #tpu.memory_space<vmem>>, vector<32x32xf32>,
    %c1_i32 = arith.constant 1 : i32
    %151 = arith.cmpi eq, %arg1, %c1_i32 : i32
    %152 = arith.extui %151 : i1 to i32
    %c0_i32_51 = arith.constant 0 : i32
    %153 = arith.cmpi ne, %152, %c0_i32_51 : i32
    scf.if %153 {
      %c0_52 = arith.constant 0 : index
      %c0_53 = arith.constant 0 : index
      %c0_54 = arith.constant 0 : index
      %154 = vector.load %arg11[%c0_52, %c0_53, %c0_54] : memref<1x32x32xf32, #tpu.memory_space<vmem>>, vector<1x32x32xf32>
      %155 = vector.shape_cast %154 : vector<1x32x32xf32> to vector<32x32xf32>
      %156 = vector.shape_cast %149 : vector<32x32xf32> to vector<1x32x32xf32>
      tpu.vector_store %arg11[%c0_52, %c0_53, %c0_54], %156 {strides = array<i32>} : memref<1x32x32xf32, #tpu.memory_space<vmem>>, vector<1x32x32xf32>,
    } else {
    }
    return
  }
  func.func @transform_0(%arg0: i32, %arg1: i32) -> (i32, i32, i32) {
    %c0_i32 = arith.constant 0 : i32
    %c0_i32_0 = arith.constant 0 : i32
    %c0_i32_1 = arith.constant 0 : i32
    return %arg0, %c0_i32, %c0_i32_0 : i32, i32, i32
  }
  func.func @transform_1(%arg0: i32, %arg1: i32) -> (i32, i32, i32) {
    %c0_i32 = arith.constant 0 : i32
    %c0_i32_0 = arith.constant 0 : i32
    %c0_i32_1 = arith.constant 0 : i32
    return %arg0, %c0_i32, %c0_i32_0 : i32, i32, i32
  }
  func.func @transform_2(%arg0: i32, %arg1: i32) -> (i32, i32, i32) {
    %c0_i32 = arith.constant 0 : i32
    %c0_i32_0 = arith.constant 0 : i32
    %c0_i32_1 = arith.constant 0 : i32
    %c0_i32_2 = arith.constant 0 : i32
    return %c0_i32, %c0_i32_0, %c0_i32_1 : i32, i32, i32
  }
  func.func @transform_3(%arg0: i32, %arg1: i32) -> (i32, i32, i32) {
    %c0_i32 = arith.constant 0 : i32
    %c0_i32_0 = arith.constant 0 : i32
    %c0_i32_1 = arith.constant 0 : i32
    %c0_i32_2 = arith.constant 0 : i32
    return %c0_i32, %c0_i32_0, %c0_i32_1 : i32, i32, i32
  }
  func.func @transform_4(%arg0: i32, %arg1: i32) -> (i32, i32, i32) {
    %c0_i32 = arith.constant 0 : i32
    %c0_i32_0 = arith.constant 0 : i32
    %c0_i32_1 = arith.constant 0 : i32
    %c0_i32_2 = arith.constant 0 : i32
    return %c0_i32, %c0_i32_0, %c0_i32_1 : i32, i32, i32
  }
  func.func @transform_5(%arg0: i32, %arg1: i32) -> (i32, i32, i32) {
    %c0_i32 = arith.constant 0 : i32
    %c0_i32_0 = arith.constant 0 : i32
    %c0_i32_1 = arith.constant 0 : i32
    %c0_i32_2 = arith.constant 0 : i32
    return %c0_i32, %c0_i32_0, %c0_i32_1 : i32, i32, i32
  }
  func.func @transform_6(%arg0: i32, %arg1: i32) -> (i32, i32, i32) {
    %c0_i32 = arith.constant 0 : i32
    %c0_i32_0 = arith.constant 0 : i32
    %c0_i32_1 = arith.constant 0 : i32
    %c0_i32_2 = arith.constant 0 : i32
    return %c0_i32, %c0_i32_0, %c0_i32_1 : i32, i32, i32
  }
  func.func @transform_7(%arg0: i32, %arg1: i32) -> (i32, i32, i32) {
    %c0_i32 = arith.constant 0 : i32
    %c0_i32_0 = arith.constant 0 : i32
    %c0_i32_1 = arith.constant 0 : i32
    %c0_i32_2 = arith.constant 0 : i32
    return %c0_i32, %c0_i32_0, %c0_i32_1 : i32, i32, i32
  }
  func.func @transform_8(%arg0: i32, %arg1: i32) -> (i32, i32, i32) {
    %c0_i32 = arith.constant 0 : i32
    %c0_i32_0 = arith.constant 0 : i32
    %c0_i32_1 = arith.constant 0 : i32
    %c0_i32_2 = arith.constant 0 : i32
    return %c0_i32, %c0_i32_0, %c0_i32_1 : i32, i32, i32
  }
  func.func @transform_9(%arg0: i32, %arg1: i32) -> (i32, i32, i32) {
    %c0_i32 = arith.constant 0 : i32
    %c0_i32_0 = arith.constant 0 : i32
    %c0_i32_1 = arith.constant 0 : i32
    return %arg0, %c0_i32, %c0_i32_0 : i32, i32, i32
  }
}

</mosaic_0001>

<llo_original>
// kernel: se_forward.1
$region0: #{se_forward.1}
  #allocation0 [shape = 'u32[]', space=smem, size = 0x4, offset = 0x4, fixed_abs, tag = 'smem constant byte address 0x4 - core index']
  #allocation1 [shape = 'u32[144,128]{1,0:T(1,128)}', space=vmem, size = 0x12000, scoped, tag = 'internal scratch']
  #allocation2 [shape = 'f32[32,32]{1,0:T(8,128)}', space=vmem, size = 0x4000, scoped, tag = 'scratch operand']
  %s0 = inlined_call_operand.vmem [shape: f32[2,32,32], index: 0, kind: input, shape index: {}]
  %s1 = inlined_call_operand.vmem [shape: f32[2,32,32], index: 1, kind: input, shape index: {}]
  %s2 = inlined_call_operand.vmem [shape: f32[4,1,32], index: 2, kind: input, shape index: {}]
  %s3 = inlined_call_operand.vmem [shape: bf16[2,32,96], index: 3, kind: input, shape index: {}]
  %s4 = inlined_call_operand.vmem [shape: f32[2,1,96], index: 4, kind: input, shape index: {}]
  %s5 = inlined_call_operand.vmem [shape: bf16[2,32,32], index: 5, kind: input, shape index: {}]
  %s6 = inlined_call_operand.vmem [shape: f32[2,1,32], index: 6, kind: input, shape index: {}]
  %s7 = inlined_call_operand.vmem [shape: f32[2,1,32], index: 7, kind: input, shape index: {}]
  %s8 = inlined_call_operand.vmem [shape: f32[2,1,32], index: 8, kind: input, shape index: {}]
  %s9 = inlined_call_operand.vmem [shape: f32[2,32,32], index: 9, kind: output, shape index: {}]
  %s10 = sld [smem:[#allocation0]]
  $region77: #{se_forward.1} parent=0
    _
  %s12 = ssub.s32 1, %s10
  %s13 = scalar_select 0, %s12, %s10
  loop: start=0, step=1, limit=6
  $region2: #{se_forward.1} parent=0 // loop_pre_header
    _
  $region3: #{se_forward.1} parent=0 // loop_header
    %s15 = sphi 0, %s19
    %p16 = scmp.ge.s32.totalorder %s15, 6
    %s22 = sphi 0, %s34
    %s23 = sphi 0, %s30
    %s24 = sphi 0, %s22
    %s25 = sphi 0, %s23
    %s26 = sphi 0, %s24
    %s27 = sphi 0, %s25
    %s37 = sphi 0, %s39
    %s40 = sphi 0, %s37
    %s41 = sphi 0, %s40
    %s57 = sphi 0, %s41
    %s63 = sphi 0, %s65
    %s66 = sphi 0, %s63
    %s67 = sphi 0, %s66
    %s83 = sphi 0, %s67
    %s87 = sphi 0, %s87
    %s89 = sphi 0, %s87
    %s90 = sphi 0, %s89
    %s104 = sphi 0, %s90
    %s108 = sphi 0, %s108
    %s110 = sphi 0, %s108
    %s111 = sphi 0, %s110
    %s125 = sphi 0, %s111
    %s129 = sphi 0, %s129
    %s131 = sphi 0, %s129
    %s132 = sphi 0, %s131
    %s146 = sphi 0, %s132
    %s150 = sphi 0, %s150
    %s152 = sphi 0, %s150
    %s153 = sphi 0, %s152
    %s167 = sphi 0, %s153
    %s171 = sphi 0, %s171
    %s173 = sphi 0, %s171
    %s174 = sphi 0, %s173
    %s188 = sphi 0, %s174
    %s192 = sphi 0, %s192
    %s194 = sphi 0, %s192
    %s195 = sphi 0, %s194
    %s209 = sphi 0, %s195
    %s213 = sphi 0, %s213
    %s215 = sphi 0, %s213
    %s216 = sphi 0, %s215
    %s230 = sphi 0, %s216
    %s236 = sphi 0, %s238
    %s239 = sphi 0, %s236
    %s240 = sphi 0, %s239
    %s256 = sphi 0, %s240
  $region4: #{se_forward.1} parent=0 // loop_header_branch
    %18 = sbr.rel (%p16) target = $region8
  $region5: #{se_forward.1} parent=0 // loop_body
    %s20 = ssub.s32 %s15, 1
    %s21 = ssub.s32 %s15, 2
    %s28 = sadd.s32 1, %s23
    %p29 = scmp.ge.s32.totalorder %s28, 2
    %s30 = scalar_select %p29, 0, %s28
    %s31 = sadd.s32 1, %s22
    %s32 = scalar_select %p29, %s31, %s22
    %p33 = scmp.ge.s32.totalorder %s32, 2
    %s34 = scalar_select %p33, 0, %s32
    %s35 = ssub.s32 %s22, %s34
    %p36 = scmp.eq.s32.totalorder %s35, 0
    %s38 = sadd.s32 %s37, 1
    %s39 = scalar_select %p36, %s37, %s38
    %p42 = pneg %p36
    %p43 = scmp.eq.s32.totalorder %s15, 3
    %p44 = por %p42, %p43
    %p45 = scmp.ne.s32.totalorder %s37, %s40
    %p46 = scmp.eq.s32.totalorder %s15, 0
    %p47 = por %p45, %p46
    %p48 = scmp.ne.s32.totalorder %s37, %s40
    %p49 = scmp.eq.s32.totalorder %s20, 3
    %p50 = por %p48, %p49
    %p51 = scmp.ne.s32.totalorder %s40, %s41
    %p52 = scmp.eq.s32.totalorder %s20, 0
    %p53 = por %p51, %p52
    %p54 = scmp.ne.s32.totalorder %s40, %s41
    %p55 = scmp.eq.s32.totalorder %s21, 3
    %p56 = por %p54, %p55
    %p58 = scmp.ne.s32.totalorder %s41, %s57
    %p59 = scmp.eq.s32.totalorder %s21, 0
    %p60 = por %p58, %p59
    %s61 = ssub.s32 %s22, %s34
    %p62 = scmp.eq.s32.totalorder %s61, 0
    %s64 = sadd.s32 %s63, 1
    %s65 = scalar_select %p62, %s63, %s64
    %p68 = pneg %p62
    %p69 = scmp.eq.s32.totalorder %s15, 3
    %p70 = por %p68, %p69
    %p71 = scmp.ne.s32.totalorder %s63, %s66
    %p72 = scmp.eq.s32.totalorder %s15, 0
    %p73 = por %p71, %p72
    %p74 = scmp.ne.s32.totalorder %s63, %s66
    %p75 = scmp.eq.s32.totalorder %s20, 3
    %p76 = por %p74, %p75
    %p77 = scmp.ne.s32.totalorder %s66, %s67
    %p78 = scmp.eq.s32.totalorder %s20, 0
    %p79 = por %p77, %p78
    %p80 = scmp.ne.s32.totalorder %s66, %s67
    %p81 = scmp.eq.s32.totalorder %s21, 3
    %p82 = por %p80, %p81
    %p84 = scmp.ne.s32.totalorder %s67, %s83
    %p85 = scmp.eq.s32.totalorder %s21, 0
    %p86 = por %p84, %p85
    %s88 = sadd.s32 %s87, 1
    %p91 = scmp.eq.s32.totalorder %s15, 3
    %p92 = scmp.ne.s32.totalorder %s87, %s89
    %p93 = scmp.eq.s32.totalorder %s15, 0
    %p94 = por %p92, %p93
    %p95 = scmp.ne.s32.totalorder %s87, %s89
    %p96 = scmp.eq.s32.totalorder %s20, 3
    %p97 = por %p95, %p96
    %p98 = scmp.ne.s32.totalorder %s89, %s90
    %p99 = scmp.eq.s32.totalorder %s20, 0
    %p100 = por %p98, %p99
    %p101 = scmp.ne.s32.totalorder %s89, %s90
    %p102 = scmp.eq.s32.totalorder %s21, 3
    %p103 = por %p101, %p102
    %p105 = scmp.ne.s32.totalorder %s90, %s104
    %p106 = scmp.eq.s32.totalorder %s21, 0
    %p107 = por %p105, %p106
    %s109 = sadd.s32 %s108, 1
    %p112 = scmp.eq.s32.totalorder %s15, 3
    %p113 = scmp.ne.s32.totalorder %s108, %s110
    %p114 = scmp.eq.s32.totalorder %s15, 0
    %p115 = por %p113, %p114
    %p116 = scmp.ne.s32.totalorder %s108, %s110
    %p117 = scmp.eq.s32.totalorder %s20, 3
    %p118 = por %p116, %p117
    %p119 = scmp.ne.s32.totalorder %s110, %s111
    %p120 = scmp.eq.s32.totalorder %s20, 0
    %p121 = por %p119, %p120
    %p122 = scmp.ne.s32.totalorder %s110, %s111
    %p123 = scmp.eq.s32.totalorder %s21, 3
    %p124 = por %p122, %p123
    %p126 = scmp.ne.s32.totalorder %s111, %s125
    %p127 = scmp.eq.s32.totalorder %s21, 0
    %p128 = por %p126, %p127
    %s130 = sadd.s32 %s129, 1
    %p133 = scmp.eq.s32.totalorder %s15, 3
    %p134 = scmp.ne.s32.totalorder %s129, %s131
    %p135 = scmp.eq.s32.totalorder %s15, 0
    %p136 = por %p134, %p135
    %p137 = scmp.ne.s32.totalorder %s129, %s131
    %p138 = scmp.eq.s32.totalorder %s20, 3
    %p139 = por %p137, %p138
    %p140 = scmp.ne.s32.totalorder %s131, %s132
    %p141 = scmp.eq.s32.totalorder %s20, 0
    %p142 = por %p140, %p141
    %p143 = scmp.ne.s32.totalorder %s131, %s132
    %p144 = scmp.eq.s32.totalorder %s21, 3
    %p145 = por %p143, %p144
    %p147 = scmp.ne.s32.totalorder %s132, %s146
    %p148 = scmp.eq.s32.totalorder %s21, 0
    %p149 = por %p147, %p148
    %s151 = sadd.s32 %s150, 1
    %p154 = scmp.eq.s32.totalorder %s15, 3
    %p155 = scmp.ne.s32.totalorder %s150, %s152
    %p156 = scmp.eq.s32.totalorder %s15, 0
    %p157 = por %p155, %p156
    %p158 = scmp.ne.s32.totalorder %s150, %s152
    %p159 = scmp.eq.s32.totalorder %s20, 3
    %p160 = por %p158, %p159
    %p161 = scmp.ne.s32.totalorder %s152, %s153
    %p162 = scmp.eq.s32.totalorder %s20, 0
    %p163 = por %p161, %p162
    %p164 = scmp.ne.s32.totalorder %s152, %s153
    %p165 = scmp.eq.s32.totalorder %s21, 3
    %p166 = por %p164, %p165
    %p168 = scmp.ne.s32.totalorder %s153, %s167
    %p169 = scmp.eq.s32.totalorder %s21, 0
    %p170 = por %p168, %p169
    %s172 = sadd.s32 %s171, 1
    %p175 = scmp.eq.s32.totalorder %s15, 3
    %p176 = scmp.ne.s32.totalorder %s171, %s173
    %p177 = scmp.eq.s32.totalorder %s15, 0
    %p178 = por %p176, %p177
    %p179 = scmp.ne.s32.totalorder %s171, %s173
    %p180 = scmp.eq.s32.totalorder %s20, 3
    %p181 = por %p179, %p180
    %p182 = scmp.ne.s32.totalorder %s173, %s174
    %p183 = scmp.eq.s32.totalorder %s20, 0
    %p184 = por %p182, %p183
    %p185 = scmp.ne.s32.totalorder %s173, %s174
    %p186 = scmp.eq.s32.totalorder %s21, 3
    %p187 = por %p185, %p186
    %p189 = scmp.ne.s32.totalorder %s174, %s188
    %p190 = scmp.eq.s32.totalorder %s21, 0
    %p191 = por %p189, %p190
    %s193 = sadd.s32 %s192, 1
    %p196 = scmp.eq.s32.totalorder %s15, 3
    %p197 = scmp.ne.s32.totalorder %s192, %s194
    %p198 = scmp.eq.s32.totalorder %s15, 0
    %p199 = por %p197, %p198
    %p200 = scmp.ne.s32.totalorder %s192, %s194
    %p201 = scmp.eq.s32.totalorder %s20, 3
    %p202 = por %p200, %p201
    %p203 = scmp.ne.s32.totalorder %s194, %s195
    %p204 = scmp.eq.s32.totalorder %s20, 0
    %p205 = por %p203, %p204
    %p206 = scmp.ne.s32.totalorder %s194, %s195
    %p207 = scmp.eq.s32.totalorder %s21, 3
    %p208 = por %p206, %p207
    %p210 = scmp.ne.s32.totalorder %s195, %s209
    %p211 = scmp.eq.s32.totalorder %s21, 0
    %p212 = por %p210, %p211
    %s214 = sadd.s32 %s213, 1
    %p217 = scmp.eq.s32.totalorder %s15, 3
    %p218 = scmp.ne.s32.totalorder %s213, %s215
    %p219 = scmp.eq.s32.totalorder %s15, 0
    %p220 = por %p218, %p219
    %p221 = scmp.ne.s32.totalorder %s213, %s215
    %p222 = scmp.eq.s32.totalorder %s20, 3
    %p223 = por %p221, %p222
    %p224 = scmp.ne.s32.totalorder %s215, %s216
    %p225 = scmp.eq.s32.totalorder %s20, 0
    %p226 = por %p224, %p225
    %p227 = scmp.ne.s32.totalorder %s215, %s216
    %p228 = scmp.eq.s32.totalorder %s21, 3
    %p229 = por %p227, %p228
    %p231 = scmp.ne.s32.totalorder %s216, %s230
    %p232 = scmp.eq.s32.totalorder %s21, 0
    %p233 = por %p231, %p232
    %s234 = ssub.s32 %s22, %s34
    %p235 = scmp.eq.s32.totalorder %s234, 0
    %s237 = sadd.s32 %s236, 1
    %s238 = scalar_select %p235, %s236, %s237
    %p241 = pneg %p235
    %p242 = scmp.eq.s32.totalorder %s15, 3
    %p243 = por %p241, %p242
    %p244 = scmp.ne.s32.totalorder %s236, %s239
    %p245 = scmp.eq.s32.totalorder %s15, 0
    %p246 = por %p244, %p245
    %p247 = scmp.ne.s32.totalorder %s236, %s239
    %p248 = scmp.eq.s32.totalorder %s20, 3
    %p249 = por %p247, %p248
    %p250 = scmp.ne.s32.totalorder %s239, %s240
    %p251 = scmp.eq.s32.totalorder %s20, 0
    %p252 = por %p250, %p251
    %p253 = scmp.ne.s32.totalorder %s239, %s240
    %p254 = scmp.eq.s32.totalorder %s21, 3
    %p255 = por %p253, %p254
    %p257 = scmp.ne.s32.totalorder %s240, %s256
    %p258 = scmp.eq.s32.totalorder %s21, 0
    %p259 = por %p257, %p258
    %p260 = scmp.le.s32.totalorder 1, %s15
    %p261 = scmp.lt.s32.totalorder %s15, 5
    %p262 = pnand %p260, %p261
    %p263 = pneg %p262
    // Predicated region
    $region9: #{se_forward.1} parent=5 // pred_check
      _
    $region10: #{se_forward.1} parent=5 // pred_check_branch
      %265 = sbr.rel (%p262) target = $region12
    $region11: #{se_forward.1} parent=5 // pred_region
      %s266 = ssub.s32 %s15, 1
      // Predicated region
      $region13: #{se_forward.1} parent=11 // pred_check
        %p267 = pneg %p100
      $region14: #{se_forward.1} parent=11 // pred_check_branch
        %269 = sbr.rel (%p267) target = $region16
      $region15: #{se_forward.1} parent=11 // pred_region
        _
      $region16: #{se_forward.1} parent=11 // pred_fallthru
        _
      // Predicated region
      $region17: #{se_forward.1} parent=11 // pred_check
        %p270 = pneg %p121
      $region18: #{se_forward.1} parent=11 // pred_check_branch
        %272 = sbr.rel (%p270) target = $region20
      $region19: #{se_forward.1} parent=11 // pred_region
        _
      $region20: #{se_forward.1} parent=11 // pred_fallthru
        _
      // Predicated region
      $region21: #{se_forward.1} parent=11 // pred_check
        %p273 = pneg %p142
      $region22: #{se_forward.1} parent=11 // pred_check_branch
        %275 = sbr.rel (%p273) target = $region24
      $region23: #{se_forward.1} parent=11 // pred_region
        _
      $region24: #{se_forward.1} parent=11 // pred_fallthru
        _
      // Predicated region
      $region25: #{se_forward.1} parent=11 // pred_check
        %p276 = pneg %p163
      $region26: #{se_forward.1} parent=11 // pred_check_branch
        %278 = sbr.rel (%p276) target = $region28
      $region27: #{se_forward.1} parent=11 // pred_region
        _
      $region28: #{se_forward.1} parent=11 // pred_fallthru
        _
      // Predicated region
      $region29: #{se_forward.1} parent=11 // pred_check
        %p279 = pneg %p184
      $region30: #{se_forward.1} parent=11 // pred_check_branch
        %281 = sbr.rel (%p279) target = $region32
      $region31: #{se_forward.1} parent=11 // pred_region
        _
      $region32: #{se_forward.1} parent=11 // pred_fallthru
        _
      // Predicated region
      $region33: #{se_forward.1} parent=11 // pred_check
        %p282 = pneg %p205
      $region34: #{se_forward.1} parent=11 // pred_check_branch
        %284 = sbr.rel (%p282) target = $region36
      $region35: #{se_forward.1} parent=11 // pred_region
        _
      $region36: #{se_forward.1} parent=11 // pred_fallthru
        _
      // Predicated region
      $region37: #{se_forward.1} parent=11 // pred_check
        %p285 = pneg %p226
      $region38: #{se_forward.1} parent=11 // pred_check_branch
        %287 = sbr.rel (%p285) target = $region40
      $region39: #{se_forward.1} parent=11 // pred_region
        _
      $region40: #{se_forward.1} parent=11 // pred_fallthru
        _
    $region12: #{se_forward.1} parent=5 // pred_fallthru
      _
    %p288 = scmp.lt.s32.totalorder %s15, 4
    // Predicated region
    $region41: #{se_forward.1} parent=5 // pred_check
      %p289 = pneg %p288
    $region42: #{se_forward.1} parent=5 // pred_check_branch
      %291 = sbr.rel (%p289) target = $region44
    $region43: #{se_forward.1} parent=5 // pred_region
      // Predicated region
      $region45: #{se_forward.1} parent=43 // pred_check
        %p292 = pneg %p47
      $region46: #{se_forward.1} parent=43 // pred_check_branch
        %294 = sbr.rel (%p292) target = $region48
      $region47: #{se_forward.1} parent=43 // pred_region
        %p295 = scmp.lt.s32.totalorder %s22, 1
        %s296 = scalar_select %p295, %s22, 1
        %s297 = smul.addr %s296, 4
        %s298 = smul.addr %s297, 8
        %s299 = scalar_lea.vmem %s0, %s298
      $region48: #{se_forward.1} parent=43 // pred_fallthru
        _
      // Predicated region
      $region49: #{se_forward.1} parent=43 // pred_check
        %p300 = pneg %p73
      $region50: #{se_forward.1} parent=43 // pred_check_branch
        %302 = sbr.rel (%p300) target = $region52
      $region51: #{se_forward.1} parent=43 // pred_region
        %p303 = scmp.lt.s32.totalorder %s22, 1
        %s304 = scalar_select %p303, %s22, 1
        %s305 = smul.addr %s304, 4
        %s306 = smul.addr %s305, 8
        %s307 = scalar_lea.vmem %s1, %s306
      $region52: #{se_forward.1} parent=43 // pred_fallthru
        _
    $region44: #{se_forward.1} parent=5 // pred_fallthru
      _
    %p308 = scmp.le.s32.totalorder 1, %s15
    %p309 = scmp.lt.s32.totalorder %s15, 5
    %p310 = pnand %p308, %p309
    %p311 = pneg %p310
    // Predicated region
    $region53: #{se_forward.1} parent=5 // pred_check
      _
    $region54: #{se_forward.1} parent=5 // pred_check_branch
      %313 = sbr.rel (%p310) target = $region56
    $region55: #{se_forward.1} parent=5 // pred_region
      %s314 = ssub.s32 %s15, 1
      %p315 = scmp.lt.s32.totalorder %s24, 1
      %s316 = scalar_select %p315, %s24, 1
      %s317 = smul.addr %s316, 4
      %s318 = smul.addr %s317, 8
      %s319 = scalar_lea.vmem %s0, %s318
      %p320 = pneg %p53
      %p321 = pneg %p50
      %p322 = scmp.lt.s32.totalorder %s24, 1
      %s323 = scalar_select %p322, %s24, 1
      %s324 = smul.addr %s323, 4
      %s325 = smul.addr %s324, 8
      %s326 = scalar_lea.vmem %s1, %s325
      %p327 = pneg %p79
      %p328 = pneg %p76
      %p329 = pneg %p100
      %p330 = pneg %p97
      %p331 = pneg %p121
      %p332 = pneg %p118
      %p333 = pneg %p142
      %p334 = pneg %p139
      %p335 = pneg %p163
      %p336 = pneg %p160
      %p337 = pneg %p184
      %p338 = pneg %p181
      %p339 = pneg %p205
      %p340 = pneg %p202
      %p341 = pneg %p226
      %p342 = pneg %p223
      %p343 = pneg %p252
      %p344 = pneg %p249
      %p345 = scmp.lt.s32.totalorder %s24, 1
      %s346 = scalar_select %p345, %s24, 1
      %s347 = smul.addr %s346, 4
      %s348 = smul.addr %s347, 8
      %s349 = scalar_lea.vmem %s9, %s348
      %p350 = scmp.lt.s32.totalorder %s24, 1
      %s351 = scalar_select %p350, %s24, 1
      %s352 = smul.addr %s351, 4
      %s353 = smul.addr %s352, 8
      %s354 = scalar_lea.vmem %s0, %s353
      %p355 = scmp.lt.s32.totalorder %s24, 1
      %s356 = scalar_select %p355, %s24, 1
      %s357 = smul.addr %s356, 4
      %s358 = smul.addr %s357, 8
      %s359 = scalar_lea.vmem %s1, %s358
      %p360 = scmp.lt.s32.totalorder %s24, 1
      %s361 = scalar_select %p360, %s24, 1
      %s362 = smul.addr %s361, 4
      %s363 = smul.addr %s362, 8
      %s364 = scalar_lea.vmem %s9, %s363
      %p366 = scmp.eq.s32.totalorder %s25, 0
      // Predicated region
      $region57: #{se_forward.1} parent=55 // pred_check
        %p367 = pneg %p366
      $region58: #{se_forward.1} parent=55 // pred_check_branch
        %369 = sbr.rel (%p367) target = $region60
      $region59: #{se_forward.1} parent=55 // pred_region
        %v370 = vld [vmem:[%s354] sm:$0xff]
        %v371 = vld [vmem:[%s354 + $0x8] sm:$0xff]
        %v372 = vld [vmem:[%s354 + $0x10] sm:$0xff]
        %v373 = vld [vmem:[%s354 + $0x18] sm:$0xff]
        %vm374 = vcmask 261120
        %375 = vst.msk [vmem:[#allocation2] sm:$0xff] %vm374, %v370
        %376 = vst.msk [vmem:[#allocation2 + $0x8] sm:$0xff] %vm374, %v371
        %377 = vst.msk [vmem:[#allocation2 + $0x10] sm:$0xff] %vm374, %v372
        %378 = vst.msk [vmem:[#allocation2 + $0x18] sm:$0xff] %vm374, %v373
      $region60: #{se_forward.1} parent=55 // pred_fallthru
        _
      %v379 = vld [vmem:[#allocation2] sm:$0xff]
      %v380 = vld [vmem:[#allocation2 + $0x8] sm:$0xff]
      %v381 = vld [vmem:[#allocation2 + $0x10] sm:$0xff]
      %v382 = vld [vmem:[#allocation2 + $0x18] sm:$0xff]
      %v383 = vpack.c.bf16 %v380, %v379
      %v384 = vpack.c.bf16 %v382, %v381
      %s385 = smul.u32 %s25, 4
      %s386 = smul.addr %s385, 4
      %s387 = scalar_lea.vmem %s3, %s386
      %v388 = vld [vmem:[%s387] sm:$0xf]
      %v389 = vld [vmem:[%s387 + $0x4] sm:$0xf]
      %v390 = vld [vmem:[%s387 + $0x8] sm:$0xf]
      %v391 = vld [vmem:[%s387 + $0xc] sm:$0xf]
      %s392 = scalar_lea.vmem %s4, %s25
      %v393 = vld [vmem:[%s392] sm:$0x1]
      %v395 = vlaneseq
      %v396 = vshrl.u32 %v395, 7
      %v397 = vsub.s32 0, %v396
      %v398 = vrot.slane %v393, %v397
      %v404 = vunpack.c.l.b16 %v388
      %v405 = vunpack.c.l.b16 %v389
      %v406 = vunpack.c.l.b16 %v390
      %v407 = vunpack.c.l.b16 %v391
      %v408 = vpack.c.b16 %v405, %v404
      %v409 = vpack.c.b16 %v407, %v406
      %vm412 = vcmask 261120
      %v414 = vsel %vm412, %v383, 0
      %v417 = vsel %vm412, %v384, 0
      %419 = vmatprep.subr.bf16.mxu0 0
      %420 = vmatpush1.bf16.msra.mxu0 0
      %421 = vmatprep.subr.bf16.mxu0 0
      %422 = vmatpush1.bf16.msra.mxu0 0
      %423 = vmatprep.subr.bf16.mxu0 0
      %424 = vmatpush1.bf16.msra.mxu0 0
      %425 = vmatprep.subr.bf16.mxu0 0
      %426 = vmatpush1.bf16.msra.mxu0 0
      %427 = vmatprep.subr.bf16.mxu0 0
      %428 = vmatpush1.bf16.msra.mxu0 0
      %429 = vmatprep.subr.bf16.mxu0 0
      %430 = vmatpush1.bf16.msra.mxu0 0
      %431 = vmatprep.subr.bf16.mxu0 0
      %432 = vmatpush1.bf16.msra.mxu0 %v409
      %433 = vmatprep.subr.bf16.mxu0 0
      %434 = vmatpush1.bf16.msra.mxu0 %v408
      %435 = vmatprep.subr.bf16.mxu0 0
      %436 = vmatpush2.bf16.msra.mxu0 0
      %437 = vmatprep.subr.bf16.mxu0 0
      %438 = vmatpush2.bf16.msra.mxu0 0
      %439 = vmatprep.subr.bf16.mxu0 0
      %440 = vmatpush2.bf16.msra.mxu0 0
      %441 = vmatprep.subr.bf16.mxu0 0
      %442 = vmatpush2.bf16.msra.mxu0 0
      %443 = vmatprep.subr.bf16.mxu0 0
      %444 = vmatpush2.bf16.msra.mxu0 0
      %445 = vmatprep.subr.bf16.mxu0 0
      %446 = vmatpush2.bf16.msra.mxu0 0
      %447 = vmatprep.subr.bf16.mxu0 0
      %448 = vmatpush2.bf16.msra.mxu0 0
      %449 = vmatprep.subr.bf16.mxu0 0
      %450 = vmatpush2.bf16.msra.mxu0 0
      %451 = vmatprep.mubr.bf16.mxu0 0
      %452 = vmatmul.mubr.bf16.gmra.mxu0 %v414
      %v453 = vpop.f32.mrf.mxu0
      %v454 = vadd.f32 %v398, %v453
      %v455 = vpop.f32.mrf.mxu0
      %v456 = vpop.f32.mrf.mxu0
      %v457 = vadd.f32 %v398, %v456
      %v458 = vpop.f32.mrf.mxu0
      %459 = vmatprep.mubr.bf16.mxu0 0
      %460 = vmatmul.mubr.bf16.gmra.mxu0 %v417
      %v461 = vpop.f32.mrf.mxu0
      %v462 = vadd.f32 %v398, %v461
      %v463 = vpop.f32.mrf.mxu0
      %v464 = vpop.f32.mrf.mxu0
      %v465 = vadd.f32 %v398, %v464
      %v466 = vpop.f32.mrf.mxu0
      %467 = vdwg.mxu0
      %v468 = vpack.c.bf16 %v457, %v454
      %v469 = vpack.c.bf16 %v465, %v462
      %v470 = vld [vmem:[%s359] sm:$0xff]
      %v471 = vld [vmem:[%s359 + $0x8] sm:$0xff]
      %v472 = vld [vmem:[%s359 + $0x10] sm:$0xff]
      %v473 = vld [vmem:[%s359 + $0x18] sm:$0xff]
      %v474 = vld [vmem:[%s2] sm:$0x1]
      %v476 = vlaneseq
      %v477 = vshrl.u32 %v476, 7
      %v478 = vsub.s32 0, %v477
      %v479 = vrot.slane %v474, %v478
      %480 = vrot.lane.b32.xlu0 %v479, 32
      %v481 = vpop.permute.xlu0 %480
      %v483 = vmul.f32 %v454, %v481
      %v484 = vmul.f32 %v457, %v481
      %v485 = vmul.f32 %v462, %v481
      %v486 = vmul.f32 %v465, %v481
      %v487 = vpack.c.bf16 %v484, %v483
      %v488 = vpack.c.bf16 %v486, %v485
      %489 = vrot.lane.b32.xlu0 %v479, 64
      %v490 = vpop.permute.xlu0 %489
      %v492 = vmul.f32 %v454, %v490
      %v493 = vmul.f32 %v457, %v490
      %v494 = vmul.f32 %v462, %v490
      %v495 = vmul.f32 %v465, %v490
      %v496 = vpack.c.bf16 %v493, %v492
      %v497 = vpack.c.bf16 %v495, %v494
      %500 = vrot.lane.b32.xlu0 %v487, 96
      %v501 = vpop.permute.xlu0 %500
      %502 = vrot.lane.b32.xlu0 %v488, 96
      %v503 = vpop.permute.xlu0 %502
      %v505 = vsel %vm412, %v468, 0
      %v508 = vsel %vm412, %v469, 0
      %v511 = vsel %vm412, %v501, 0
      %v514 = vsel %vm412, %v503, 0
      %516 = vmatprep.subr.bf16.mxu0 0
      %517 = vmatpush1.bf16.xpose.msra.mxu0 0
      %518 = vmatprep.subr.bf16.mxu0 0
      %519 = vmatpush1.bf16.xpose.msra.mxu0 0
      %520 = vmatprep.subr.bf16.mxu0 0
      %521 = vmatpush1.bf16.xpose.msra.mxu0 0
      %522 = vmatprep.subr.bf16.mxu0 0
      %523 = vmatpush1.bf16.xpose.msra.mxu0 0
      %524 = vmatprep.subr.bf16.mxu0 0
      %525 = vmatpush1.bf16.xpose.msra.mxu0 0
      %526 = vmatprep.subr.bf16.mxu0 0
      %527 = vmatpush1.bf16.xpose.msra.mxu0 0
      %528 = vmatprep.subr.bf16.mxu0 0
      %529 = vmatpush1.bf16.xpose.msra.mxu0 %v514
      %530 = vmatprep.subr.bf16.mxu0 0
      %531 = vmatpush1.bf16.xpose.msra.mxu0 %v511
      %532 = vmatprep.subr.bf16.mxu0 0
      %533 = vmatpush2.bf16.xpose.msra.mxu0 0
      %534 = vmatprep.subr.bf16.mxu0 0
      %535 = vmatpush2.bf16.xpose.msra.mxu0 0
      %536 = vmatprep.subr.bf16.mxu0 0
      %537 = vmatpush2.bf16.xpose.msra.mxu0 0
      %538 = vmatprep.subr.bf16.mxu0 0
      %539 = vmatpush2.bf16.xpose.msra.mxu0 0
      %540 = vmatprep.subr.bf16.mxu0 0
      %541 = vmatpush2.bf16.xpose.msra.mxu0 0
      %542 = vmatprep.subr.bf16.mxu0 0
      %543 = vmatpush2.bf16.xpose.msra.mxu0 0
      %544 = vmatprep.subr.bf16.mxu0 0
      %545 = vmatpush2.bf16.xpose.msra.mxu0 0
      %546 = vmatprep.subr.bf16.mxu0 0
      %547 = vmatpush2.bf16.xpose.msra.mxu0 0
      %548 = vmatprep.mubr.bf16.mxu0 0
      %549 = vmatmul.mubr.bf16.gmra.mxu0 %v505
      %v550 = vpop.f32.mrf.mxu0
      %v551 = vadd.f32 %v470, %v550
      %v552 = vpop.f32.mrf.mxu0
      %v553 = vpop.f32.mrf.mxu0
      %v554 = vadd.f32 %v471, %v553
      %v555 = vpop.f32.mrf.mxu0
      %556 = vmatprep.mubr.bf16.mxu0 0
      %557 = vmatmul.mubr.bf16.gmra.mxu0 %v508
      %v558 = vpop.f32.mrf.mxu0
      %v559 = vadd.f32 %v472, %v558
      %v560 = vpop.f32.mrf.mxu0
      %v561 = vpop.f32.mrf.mxu0
      %v562 = vadd.f32 %v473, %v561
      %v563 = vpop.f32.mrf.mxu0
      %564 = vdwg.mxu0
      %v565 = vsel %vm412, %v551, -inf
      %566 = vmax.xlane.f32.xlu0 %v565
      %v567 = vpop.xlane.xlu0 %566
      %v568 = vsel %vm412, %v554, -inf
      %569 = vmax.xlane.f32.xlu0 %v568
      %v570 = vpop.xlane.xlu0 %569
      %v571 = vsel %vm412, %v559, -inf
      %572 = vmax.xlane.f32.xlu0 %v571
      %v573 = vpop.xlane.xlu0 %572
      %v574 = vsel %vm412, %v562, -inf
      %575 = vmax.xlane.f32.xlu0 %v574
      %v576 = vpop.xlane.xlu0 %575
      %v577 = vsub.f32 %v551, %v567
      %v578 = vsub.f32 %v554, %v570
      %v579 = vsub.f32 %v559, %v573
      %v580 = vsub.f32 %v562, %v576
      %v581 = vmul.f32 %v577, 1.442695
      %v582 = vpow.pop %v581
      %v583 = vmul.f32 %v578, 1.442695
      %v584 = vpow.pop %v583
      %v585 = vmul.f32 %v579, 1.442695
      %v586 = vpow.pop %v585
      %v587 = vmul.f32 %v580, 1.442695
      %v588 = vpow.pop %v587
      %v589 = vsel %vm412, %v582, 0.0
      %590 = vadd.xlane.f32.xlu0 %v589
      %v591 = vpop.xlane.xlu0 %590
      %v592 = vsel %vm412, %v584, 0.0
      %593 = vadd.xlane.f32.xlu0 %v592
      %v594 = vpop.xlane.xlu0 %593
      %v595 = vsel %vm412, %v586, 0.0
      %596 = vadd.xlane.f32.xlu0 %v595
      %v597 = vpop.xlane.xlu0 %596
      %v598 = vsel %vm412, %v588, 0.0
      %599 = vadd.xlane.f32.xlu0 %v598
      %v600 = vpop.xlane.xlu0 %599
      %v601 = vrcp.pop %v591
      %v602 = vrcp.pop %v594
      %v603 = vrcp.pop %v597
      %v604 = vrcp.pop %v600
      %v605 = vmul.f32 %v582, %v601
      %v606 = vmul.f32 %v584, %v602
      %v607 = vmul.f32 %v586, %v603
      %v608 = vmul.f32 %v588, %v604
      %v609 = vpack.c.bf16 %v606, %v605
      %v610 = vpack.c.bf16 %v608, %v607
      %s611 = scalar_lea.vmem %s2, 1
      %v612 = vld [vmem:[%s611] sm:$0x1]
      %v614 = vlaneseq
      %v615 = vshrl.u32 %v614, 7
      %v616 = vsub.s32 0, %v615
      %v617 = vrot.slane %v612, %v616
      %618 = vrot.lane.b32.xlu0 %v617, 32
      %v619 = vpop.permute.xlu0 %618
      %v621 = vmul.f32 %v454, %v619
      %v622 = vmul.f32 %v457, %v619
      %v623 = vmul.f32 %v462, %v619
      %v624 = vmul.f32 %v465, %v619
      %v625 = vpack.c.bf16 %v622, %v621
      %v626 = vpack.c.bf16 %v624, %v623
      %627 = vrot.lane.b32.xlu0 %v617, 64
      %v628 = vpop.permute.xlu0 %627
      %v630 = vmul.f32 %v454, %v628
      %v631 = vmul.f32 %v457, %v628
      %v632 = vmul.f32 %v462, %v628
      %v633 = vmul.f32 %v465, %v628
      %v634 = vpack.c.bf16 %v631, %v630
      %v635 = vpack.c.bf16 %v633, %v632
      %638 = vrot.lane.b32.xlu0 %v625, 96
      %v639 = vpop.permute.xlu0 %638
      %640 = vrot.lane.b32.xlu0 %v626, 96
      %v641 = vpop.permute.xlu0 %640
      %v643 = vsel %vm412, %v639, 0
      %v646 = vsel %vm412, %v641, 0
      %648 = vmatprep.subr.bf16.mxu0 0
      %649 = vmatpush1.bf16.xpose.msra.mxu0 0
      %650 = vmatprep.subr.bf16.mxu0 0
      %651 = vmatpush1.bf16.xpose.msra.mxu0 0
      %652 = vmatprep.subr.bf16.mxu0 0
      %653 = vmatpush1.bf16.xpose.msra.mxu0 0
      %654 = vmatprep.subr.bf16.mxu0 0
      %655 = vmatpush1.bf16.xpose.msra.mxu0 0
      %656 = vmatprep.subr.bf16.mxu0 0
      %657 = vmatpush1.bf16.xpose.msra.mxu0 0
      %658 = vmatprep.subr.bf16.mxu0 0
      %659 = vmatpush1.bf16.xpose.msra.mxu0 0
      %660 = vmatprep.subr.bf16.mxu0 0
      %661 = vmatpush1.bf16.xpose.msra.mxu0 %v646
      %662 = vmatprep.subr.bf16.mxu0 0
      %663 = vmatpush1.bf16.xpose.msra.mxu0 %v643
      %664 = vmatprep.subr.bf16.mxu0 0
      %665 = vmatpush2.bf16.xpose.msra.mxu0 0
      %666 = vmatprep.subr.bf16.mxu0 0
      %667 = vmatpush2.bf16.xpose.msra.mxu0 0
      %668 = vmatprep.subr.bf16.mxu0 0
      %669 = vmatpush2.bf16.xpose.msra.mxu0 0
      %670 = vmatprep.subr.bf16.mxu0 0
      %671 = vmatpush2.bf16.xpose.msra.mxu0 0
      %672 = vmatprep.subr.bf16.mxu0 0
      %673 = vmatpush2.bf16.xpose.msra.mxu0 0
      %674 = vmatprep.subr.bf16.mxu0 0
      %675 = vmatpush2.bf16.xpose.msra.mxu0 0
      %676 = vmatprep.subr.bf16.mxu0 0
      %677 = vmatpush2.bf16.xpose.msra.mxu0 0
      %678 = vmatprep.subr.bf16.mxu0 0
      %679 = vmatpush2.bf16.xpose.msra.mxu0 0
      %680 = vmatprep.mubr.bf16.mxu0 0
      %681 = vmatmul.mubr.bf16.gmra.mxu0 %v505
      %v682 = vpop.f32.mrf.mxu0
      %v683 = vadd.f32 %v470, %v682
      %v684 = vpop.f32.mrf.mxu0
      %v685 = vpop.f32.mrf.mxu0
      %v686 = vadd.f32 %v471, %v685
      %v687 = vpop.f32.mrf.mxu0
      %688 = vmatprep.mubr.bf16.mxu0 0
      %689 = vmatmul.mubr.bf16.gmra.mxu0 %v508
      %v690 = vpop.f32.mrf.mxu0
      %v691 = vadd.f32 %v472, %v690
      %v692 = vpop.f32.mrf.mxu0
      %v693 = vpop.f32.mrf.mxu0
      %v694 = vadd.f32 %v473, %v693
      %v695 = vpop.f32.mrf.mxu0
      %696 = vdwg.mxu0
      %v697 = vsel %vm412, %v683, -inf
      %698 = vmax.xlane.f32.xlu0 %v697
      %v699 = vpop.xlane.xlu0 %698
      %v700 = vsel %vm412, %v686, -inf
      %701 = vmax.xlane.f32.xlu0 %v700
      %v702 = vpop.xlane.xlu0 %701
      %v703 = vsel %vm412, %v691, -inf
      %704 = vmax.xlane.f32.xlu0 %v703
      %v705 = vpop.xlane.xlu0 %704
      %v706 = vsel %vm412, %v694, -inf
      %707 = vmax.xlane.f32.xlu0 %v706
      %v708 = vpop.xlane.xlu0 %707
      %v709 = vsub.f32 %v683, %v699
      %v710 = vsub.f32 %v686, %v702
      %v711 = vsub.f32 %v691, %v705
      %v712 = vsub.f32 %v694, %v708
      %v713 = vmul.f32 %v709, 1.442695
      %v714 = vpow.pop %v713
      %v715 = vmul.f32 %v710, 1.442695
      %v716 = vpow.pop %v715
      %v717 = vmul.f32 %v711, 1.442695
      %v718 = vpow.pop %v717
      %v719 = vmul.f32 %v712, 1.442695
      %v720 = vpow.pop %v719
      %v721 = vsel %vm412, %v714, 0.0
      %722 = vadd.xlane.f32.xlu0 %v721
      %v723 = vpop.xlane.xlu0 %722
      %v724 = vsel %vm412, %v716, 0.0
      %725 = vadd.xlane.f32.xlu0 %v724
      %v726 = vpop.xlane.xlu0 %725
      %v727 = vsel %vm412, %v718, 0.0
      %728 = vadd.xlane.f32.xlu0 %v727
      %v729 = vpop.xlane.xlu0 %728
      %v730 = vsel %vm412, %v720, 0.0
      %731 = vadd.xlane.f32.xlu0 %v730
      %v732 = vpop.xlane.xlu0 %731
      %v733 = vrcp.pop %v723
      %v734 = vrcp.pop %v726
      %v735 = vrcp.pop %v729
      %v736 = vrcp.pop %v732
      %v737 = vmul.f32 %v714, %v733
      %v738 = vmul.f32 %v716, %v734
      %v739 = vmul.f32 %v718, %v735
      %v740 = vmul.f32 %v720, %v736
      %v741 = vpack.c.bf16 %v738, %v737
      %v742 = vpack.c.bf16 %v740, %v739
      %745 = vrot.lane.b32.xlu0 %v634, 64
      %v746 = vpop.permute.xlu0 %745
      %747 = vrot.lane.b32.xlu0 %v635, 64
      %v748 = vpop.permute.xlu0 %747
      %v752 = vsel %vm412, %v741, 0
      %v755 = vsel %vm412, %v742, 0
      %757 = vmatprep.subr.bf16.mxu0 0
      %758 = vmatpush1.bf16.msra.mxu0 0
      %759 = vmatprep.subr.bf16.mxu0 0
      %760 = vmatpush1.bf16.msra.mxu0 0
      %761 = vmatprep.subr.bf16.mxu0 0
      %762 = vmatpush1.bf16.msra.mxu0 0
      %763 = vmatprep.subr.bf16.mxu0 0
      %764 = vmatpush1.bf16.msra.mxu0 0
      %765 = vmatprep.subr.bf16.mxu0 0
      %766 = vmatpush1.bf16.msra.mxu0 0
      %767 = vmatprep.subr.bf16.mxu0 0
      %768 = vmatpush1.bf16.msra.mxu0 0
      %769 = vmatprep.subr.bf16.mxu0 0
      %770 = vmatpush1.bf16.msra.mxu0 %v748
      %771 = vmatprep.subr.bf16.mxu0 0
      %772 = vmatpush1.bf16.msra.mxu0 %v746
      %773 = vmatprep.subr.bf16.mxu0 0
      %774 = vmatpush2.bf16.msra.mxu0 0
      %775 = vmatprep.subr.bf16.mxu0 0
      %776 = vmatpush2.bf16.msra.mxu0 0
      %777 = vmatprep.subr.bf16.mxu0 0
      %778 = vmatpush2.bf16.msra.mxu0 0
      %779 = vmatprep.subr.bf16.mxu0 0
      %780 = vmatpush2.bf16.msra.mxu0 0
      %781 = vmatprep.subr.bf16.mxu0 0
      %782 = vmatpush2.bf16.msra.mxu0 0
      %783 = vmatprep.subr.bf16.mxu0 0
      %784 = vmatpush2.bf16.msra.mxu0 0
      %785 = vmatprep.subr.bf16.mxu0 0
      %786 = vmatpush2.bf16.msra.mxu0 0
      %787 = vmatprep.subr.bf16.mxu0 0
      %788 = vmatpush2.bf16.msra.mxu0 0
      %789 = vmatprep.mubr.bf16.mxu0 0
      %790 = vmatmul.mubr.bf16.gmra.mxu0 %v752
      %v791 = vpop.f32.mrf.mxu0
      %v792 = vadd.f32 0.0, %v791
      %v793 = vpop.f32.mrf.mxu0
      %v794 = vpop.f32.mrf.mxu0
      %v795 = vadd.f32 0.0, %v794
      %v796 = vpop.f32.mrf.mxu0
      %797 = vmatprep.mubr.bf16.mxu0 0
      %798 = vmatmul.mubr.bf16.gmra.mxu0 %v755
      %v799 = vpop.f32.mrf.mxu0
      %v800 = vadd.f32 0.0, %v799
      %v801 = vpop.f32.mrf.mxu0
      %v802 = vpop.f32.mrf.mxu0
      %v803 = vadd.f32 0.0, %v802
      %v804 = vpop.f32.mrf.mxu0
      %805 = vdwg.mxu0
      %808 = vrot.lane.b32.xlu0 %v496, 64
      %v809 = vpop.permute.xlu0 %808
      %810 = vrot.lane.b32.xlu0 %v497, 64
      %v811 = vpop.permute.xlu0 %810
      %v815 = vsel %vm412, %v609, 0
      %v818 = vsel %vm412, %v610, 0
      %820 = vmatprep.subr.bf16.mxu0 0
      %821 = vmatpush1.bf16.msra.mxu0 0
      %822 = vmatprep.subr.bf16.mxu0 0
      %823 = vmatpush1.bf16.msra.mxu0 0
      %824 = vmatprep.subr.bf16.mxu0 0
      %825 = vmatpush1.bf16.msra.mxu0 0
      %826 = vmatprep.subr.bf16.mxu0 0
      %827 = vmatpush1.bf16.msra.mxu0 0
      %828 = vmatprep.subr.bf16.mxu0 0
      %829 = vmatpush1.bf16.msra.mxu0 0
      %830 = vmatprep.subr.bf16.mxu0 0
      %831 = vmatpush1.bf16.msra.mxu0 0
      %832 = vmatprep.subr.bf16.mxu0 0
      %833 = vmatpush1.bf16.msra.mxu0 %v811
      %834 = vmatprep.subr.bf16.mxu0 0
      %835 = vmatpush1.bf16.msra.mxu0 %v809
      %836 = vmatprep.subr.bf16.mxu0 0
      %837 = vmatpush2.bf16.msra.mxu0 0
      %838 = vmatprep.subr.bf16.mxu0 0
      %839 = vmatpush2.bf16.msra.mxu0 0
      %840 = vmatprep.subr.bf16.mxu0 0
      %841 = vmatpush2.bf16.msra.mxu0 0
      %842 = vmatprep.subr.bf16.mxu0 0
      %843 = vmatpush2.bf16.msra.mxu0 0
      %844 = vmatprep.subr.bf16.mxu0 0
      %845 = vmatpush2.bf16.msra.mxu0 0
      %846 = vmatprep.subr.bf16.mxu0 0
      %847 = vmatpush2.bf16.msra.mxu0 0
      %848 = vmatprep.subr.bf16.mxu0 0
      %849 = vmatpush2.bf16.msra.mxu0 0
      %850 = vmatprep.subr.bf16.mxu0 0
      %851 = vmatpush2.bf16.msra.mxu0 0
      %852 = vmatprep.mubr.bf16.mxu0 0
      %853 = vmatmul.mubr.bf16.gmra.mxu0 %v815
      %v854 = vpop.f32.mrf.mxu0
      %v855 = vadd.f32 %v792, %v854
      %v856 = vpop.f32.mrf.mxu0
      %v857 = vpop.f32.mrf.mxu0
      %v858 = vadd.f32 %v795, %v857
      %v859 = vpop.f32.mrf.mxu0
      %860 = vmatprep.mubr.bf16.mxu0 0
      %861 = vmatmul.mubr.bf16.gmra.mxu0 %v818
      %v862 = vpop.f32.mrf.mxu0
      %v863 = vadd.f32 %v800, %v862
      %v864 = vpop.f32.mrf.mxu0
      %v865 = vpop.f32.mrf.mxu0
      %v866 = vadd.f32 %v803, %v865
      %v867 = vpop.f32.mrf.mxu0
      %868 = vdwg.mxu0
      %s869 = scalar_lea.vmem %s2, 2
      %v870 = vld [vmem:[%s869] sm:$0x1]
      %v872 = vlaneseq
      %v873 = vshrl.u32 %v872, 7
      %v874 = vsub.s32 0, %v873
      %v875 = vrot.slane %v870, %v874
      %876 = vrot.lane.b32.xlu0 %v875, 32
      %v877 = vpop.permute.xlu0 %876
      %v879 = vmul.f32 %v454, %v877
      %v880 = vmul.f32 %v457, %v877
      %v881 = vmul.f32 %v462, %v877
      %v882 = vmul.f32 %v465, %v877
      %v883 = vpack.c.bf16 %v880, %v879
      %v884 = vpack.c.bf16 %v882, %v881
      %885 = vrot.lane.b32.xlu0 %v875, 64
      %v886 = vpop.permute.xlu0 %885
      %v888 = vmul.f32 %v454, %v886
      %v889 = vmul.f32 %v457, %v886
      %v890 = vmul.f32 %v462, %v886
      %v891 = vmul.f32 %v465, %v886
      %v892 = vpack.c.bf16 %v889, %v888
      %v893 = vpack.c.bf16 %v891, %v890
      %896 = vrot.lane.b32.xlu0 %v883, 96
      %v897 = vpop.permute.xlu0 %896
      %898 = vrot.lane.b32.xlu0 %v884, 96
      %v899 = vpop.permute.xlu0 %898
      %v901 = vsel %vm412, %v897, 0
      %v904 = vsel %vm412, %v899, 0
      %906 = vmatprep.subr.bf16.mxu0 0
      %907 = vmatpush1.bf16.xpose.msra.mxu0 0
      %908 = vmatprep.subr.bf16.mxu0 0
      %909 = vmatpush1.bf16.xpose.msra.mxu0 0
      %910 = vmatprep.subr.bf16.mxu0 0
      %911 = vmatpush1.bf16.xpose.msra.mxu0 0
      %912 = vmatprep.subr.bf16.mxu0 0
      %913 = vmatpush1.bf16.xpose.msra.mxu0 0
      %914 = vmatprep.subr.bf16.mxu0 0
      %915 = vmatpush1.bf16.xpose.msra.mxu0 0
      %916 = vmatprep.subr.bf16.mxu0 0
      %917 = vmatpush1.bf16.xpose.msra.mxu0 0
      %918 = vmatprep.subr.bf16.mxu0 0
      %919 = vmatpush1.bf16.xpose.msra.mxu0 %v904
      %920 = vmatprep.subr.bf16.mxu0 0
      %921 = vmatpush1.bf16.xpose.msra.mxu0 %v901
      %922 = vmatprep.subr.bf16.mxu0 0
      %923 = vmatpush2.bf16.xpose.msra.mxu0 0
      %924 = vmatprep.subr.bf16.mxu0 0
      %925 = vmatpush2.bf16.xpose.msra.mxu0 0
      %926 = vmatprep.subr.bf16.mxu0 0
      %927 = vmatpush2.bf16.xpose.msra.mxu0 0
      %928 = vmatprep.subr.bf16.mxu0 0
      %929 = vmatpush2.bf16.xpose.msra.mxu0 0
      %930 = vmatprep.subr.bf16.mxu0 0
      %931 = vmatpush2.bf16.xpose.msra.mxu0 0
      %932 = vmatprep.subr.bf16.mxu0 0
      %933 = vmatpush2.bf16.xpose.msra.mxu0 0
      %934 = vmatprep.subr.bf16.mxu0 0
      %935 = vmatpush2.bf16.xpose.msra.mxu0 0
      %936 = vmatprep.subr.bf16.mxu0 0
      %937 = vmatpush2.bf16.xpose.msra.mxu0 0
      %938 = vmatprep.mubr.bf16.mxu0 0
      %939 = vmatmul.mubr.bf16.gmra.mxu0 %v505
      %v940 = vpop.f32.mrf.mxu0
      %v941 = vadd.f32 %v470, %v940
      %v942 = vpop.f32.mrf.mxu0
      %v943 = vpop.f32.mrf.mxu0
      %v944 = vadd.f32 %v471, %v943
      %v945 = vpop.f32.mrf.mxu0
      %946 = vmatprep.mubr.bf16.mxu0 0
      %947 = vmatmul.mubr.bf16.gmra.mxu0 %v508
      %v948 = vpop.f32.mrf.mxu0
      %v949 = vadd.f32 %v472, %v948
      %v950 = vpop.f32.mrf.mxu0
      %v951 = vpop.f32.mrf.mxu0
      %v952 = vadd.f32 %v473, %v951
      %v953 = vpop.f32.mrf.mxu0
      %954 = vdwg.mxu0
      %v955 = vsel %vm412, %v941, -inf
      %956 = vmax.xlane.f32.xlu0 %v955
      %v957 = vpop.xlane.xlu0 %956
      %v958 = vsel %vm412, %v944, -inf
      %959 = vmax.xlane.f32.xlu0 %v958
      %v960 = vpop.xlane.xlu0 %959
      %v961 = vsel %vm412, %v949, -inf
      %962 = vmax.xlane.f32.xlu0 %v961
      %v963 = vpop.xlane.xlu0 %962
      %v964 = vsel %vm412, %v952, -inf
      %965 = vmax.xlane.f32.xlu0 %v964
      %v966 = vpop.xlane.xlu0 %965
      %v967 = vsub.f32 %v941, %v957
      %v968 = vsub.f32 %v944, %v960
      %v969 = vsub.f32 %v949, %v963
      %v970 = vsub.f32 %v952, %v966
      %v971 = vmul.f32 %v967, 1.442695
      %v972 = vpow.pop %v971
      %v973 = vmul.f32 %v968, 1.442695
      %v974 = vpow.pop %v973
      %v975 = vmul.f32 %v969, 1.442695
      %v976 = vpow.pop %v975
      %v977 = vmul.f32 %v970, 1.442695
      %v978 = vpow.pop %v977
      %v979 = vsel %vm412, %v972, 0.0
      %980 = vadd.xlane.f32.xlu0 %v979
      %v981 = vpop.xlane.xlu0 %980
      %v982 = vsel %vm412, %v974, 0.0
      %983 = vadd.xlane.f32.xlu0 %v982
      %v984 = vpop.xlane.xlu0 %983
      %v985 = vsel %vm412, %v976, 0.0
      %986 = vadd.xlane.f32.xlu0 %v985
      %v987 = vpop.xlane.xlu0 %986
      %v988 = vsel %vm412, %v978, 0.0
      %989 = vadd.xlane.f32.xlu0 %v988
      %v990 = vpop.xlane.xlu0 %989
      %v991 = vrcp.pop %v981
      %v992 = vrcp.pop %v984
      %v993 = vrcp.pop %v987
      %v994 = vrcp.pop %v990
      %v995 = vmul.f32 %v972, %v991
      %v996 = vmul.f32 %v974, %v992
      %v997 = vmul.f32 %v976, %v993
      %v998 = vmul.f32 %v978, %v994
      %v999 = vpack.c.bf16 %v996, %v995
      %v1000 = vpack.c.bf16 %v998, %v997
      %1003 = vrot.lane.b32.xlu0 %v892, 64
      %v1004 = vpop.permute.xlu0 %1003
      %1005 = vrot.lane.b32.xlu0 %v893, 64
      %v1006 = vpop.permute.xlu0 %1005
      %v1010 = vsel %vm412, %v999, 0
      %v1013 = vsel %vm412, %v1000, 0
      %1015 = vmatprep.subr.bf16.mxu0 0
      %1016 = vmatpush1.bf16.msra.mxu0 0
      %1017 = vmatprep.subr.bf16.mxu0 0
      %1018 = vmatpush1.bf16.msra.mxu0 0
      %1019 = vmatprep.subr.bf16.mxu0 0
      %1020 = vmatpush1.bf16.msra.mxu0 0
      %1021 = vmatprep.subr.bf16.mxu0 0
      %1022 = vmatpush1.bf16.msra.mxu0 0
      %1023 = vmatprep.subr.bf16.mxu0 0
      %1024 = vmatpush1.bf16.msra.mxu0 0
      %1025 = vmatprep.subr.bf16.mxu0 0
      %1026 = vmatpush1.bf16.msra.mxu0 0
      %1027 = vmatprep.subr.bf16.mxu0 0
      %1028 = vmatpush1.bf16.msra.mxu0 %v1006
      %1029 = vmatprep.subr.bf16.mxu0 0
      %1030 = vmatpush1.bf16.msra.mxu0 %v1004
      %1031 = vmatprep.subr.bf16.mxu0 0
      %1032 = vmatpush2.bf16.msra.mxu0 0
      %1033 = vmatprep.subr.bf16.mxu0 0
      %1034 = vmatpush2.bf16.msra.mxu0 0
      %1035 = vmatprep.subr.bf16.mxu0 0
      %1036 = vmatpush2.bf16.msra.mxu0 0
      %1037 = vmatprep.subr.bf16.mxu0 0
      %1038 = vmatpush2.bf16.msra.mxu0 0
      %1039 = vmatprep.subr.bf16.mxu0 0
      %1040 = vmatpush2.bf16.msra.mxu0 0
      %1041 = vmatprep.subr.bf16.mxu0 0
      %1042 = vmatpush2.bf16.msra.mxu0 0
      %1043 = vmatprep.subr.bf16.mxu0 0
      %1044 = vmatpush2.bf16.msra.mxu0 0
      %1045 = vmatprep.subr.bf16.mxu0 0
      %1046 = vmatpush2.bf16.msra.mxu0 0
      %1047 = vmatprep.mubr.bf16.mxu0 0
      %1048 = vmatmul.mubr.bf16.gmra.mxu0 %v1010
      %v1049 = vpop.f32.mrf.mxu0
      %v1050 = vadd.f32 0.0, %v1049
      %v1051 = vpop.f32.mrf.mxu0
      %v1052 = vpop.f32.mrf.mxu0
      %v1053 = vadd.f32 0.0, %v1052
      %v1054 = vpop.f32.mrf.mxu0
      %1055 = vmatprep.mubr.bf16.mxu0 0
      %1056 = vmatmul.mubr.bf16.gmra.mxu0 %v1013
      %v1057 = vpop.f32.mrf.mxu0
      %v1058 = vadd.f32 0.0, %v1057
      %v1059 = vpop.f32.mrf.mxu0
      %v1060 = vpop.f32.mrf.mxu0
      %v1061 = vadd.f32 0.0, %v1060
      %v1062 = vpop.f32.mrf.mxu0
      %1063 = vdwg.mxu0
      %v1064 = vadd.f32 %v855, %v1050
      %v1065 = vadd.f32 %v858, %v1053
      %v1066 = vadd.f32 %v863, %v1058
      %v1067 = vadd.f32 %v866, %v1061
      %s1068 = scalar_lea.vmem %s2, 3
      %v1069 = vld [vmem:[%s1068] sm:$0x1]
      %v1071 = vlaneseq
      %v1072 = vshrl.u32 %v1071, 7
      %v1073 = vsub.s32 0, %v1072
      %v1074 = vrot.slane %v1069, %v1073
      %1075 = vrot.lane.b32.xlu0 %v1074, 32
      %v1076 = vpop.permute.xlu0 %1075
      %v1078 = vmul.f32 %v454, %v1076
      %v1079 = vmul.f32 %v457, %v1076
      %v1080 = vmul.f32 %v462, %v1076
      %v1081 = vmul.f32 %v465, %v1076
      %v1082 = vpack.c.bf16 %v1079, %v1078
      %v1083 = vpack.c.bf16 %v1081, %v1080
      %1084 = vrot.lane.b32.xlu0 %v1074, 64
      %v1085 = vpop.permute.xlu0 %1084
      %v1087 = vmul.f32 %v454, %v1085
      %v1088 = vmul.f32 %v457, %v1085
      %v1089 = vmul.f32 %v462, %v1085
      %v1090 = vmul.f32 %v465, %v1085
      %v1091 = vpack.c.bf16 %v1088, %v1087
      %v1092 = vpack.c.bf16 %v1090, %v1089
      %1095 = vrot.lane.b32.xlu0 %v1082, 96
      %v1096 = vpop.permute.xlu0 %1095
      %1097 = vrot.lane.b32.xlu0 %v1083, 96
      %v1098 = vpop.permute.xlu0 %1097
      %v1100 = vsel %vm412, %v1096, 0
      %v1103 = vsel %vm412, %v1098, 0
      %1105 = vmatprep.subr.bf16.mxu0 0
      %1106 = vmatpush1.bf16.xpose.msra.mxu0 0
      %1107 = vmatprep.subr.bf16.mxu0 0
      %1108 = vmatpush1.bf16.xpose.msra.mxu0 0
      %1109 = vmatprep.subr.bf16.mxu0 0
      %1110 = vmatpush1.bf16.xpose.msra.mxu0 0
      %1111 = vmatprep.subr.bf16.mxu0 0
      %1112 = vmatpush1.bf16.xpose.msra.mxu0 0
      %1113 = vmatprep.subr.bf16.mxu0 0
      %1114 = vmatpush1.bf16.xpose.msra.mxu0 0
      %1115 = vmatprep.subr.bf16.mxu0 0
      %1116 = vmatpush1.bf16.xpose.msra.mxu0 0
      %1117 = vmatprep.subr.bf16.mxu0 0
      %1118 = vmatpush1.bf16.xpose.msra.mxu0 %v1103
      %1119 = vmatprep.subr.bf16.mxu0 0
      %1120 = vmatpush1.bf16.xpose.msra.mxu0 %v1100
      %1121 = vmatprep.subr.bf16.mxu0 0
      %1122 = vmatpush2.bf16.xpose.msra.mxu0 0
      %1123 = vmatprep.subr.bf16.mxu0 0
      %1124 = vmatpush2.bf16.xpose.msra.mxu0 0
      %1125 = vmatprep.subr.bf16.mxu0 0
      %1126 = vmatpush2.bf16.xpose.msra.mxu0 0
      %1127 = vmatprep.subr.bf16.mxu0 0
      %1128 = vmatpush2.bf16.xpose.msra.mxu0 0
      %1129 = vmatprep.subr.bf16.mxu0 0
      %1130 = vmatpush2.bf16.xpose.msra.mxu0 0
      %1131 = vmatprep.subr.bf16.mxu0 0
      %1132 = vmatpush2.bf16.xpose.msra.mxu0 0
      %1133 = vmatprep.subr.bf16.mxu0 0
      %1134 = vmatpush2.bf16.xpose.msra.mxu0 0
      %1135 = vmatprep.subr.bf16.mxu0 0
      %1136 = vmatpush2.bf16.xpose.msra.mxu0 0
      %1137 = vmatprep.mubr.bf16.mxu0 0
      %1138 = vmatmul.mubr.bf16.gmra.mxu0 %v505
      %v1139 = vpop.f32.mrf.mxu0
      %v1140 = vadd.f32 %v470, %v1139
      %v1141 = vpop.f32.mrf.mxu0
      %v1142 = vpop.f32.mrf.mxu0
      %v1143 = vadd.f32 %v471, %v1142
      %v1144 = vpop.f32.mrf.mxu0
      %1145 = vmatprep.mubr.bf16.mxu0 0
      %1146 = vmatmul.mubr.bf16.gmra.mxu0 %v508
      %v1147 = vpop.f32.mrf.mxu0
      %v1148 = vadd.f32 %v472, %v1147
      %v1149 = vpop.f32.mrf.mxu0
      %v1150 = vpop.f32.mrf.mxu0
      %v1151 = vadd.f32 %v473, %v1150
      %v1152 = vpop.f32.mrf.mxu0
      %1153 = vdwg.mxu0
      %v1154 = vsel %vm412, %v1140, -inf
      %1155 = vmax.xlane.f32.xlu0 %v1154
      %v1156 = vpop.xlane.xlu0 %1155
      %v1157 = vsel %vm412, %v1143, -inf
      %1158 = vmax.xlane.f32.xlu0 %v1157
      %v1159 = vpop.xlane.xlu0 %1158
      %v1160 = vsel %vm412, %v1148, -inf
      %1161 = vmax.xlane.f32.xlu0 %v1160
      %v1162 = vpop.xlane.xlu0 %1161
      %v1163 = vsel %vm412, %v1151, -inf
      %1164 = vmax.xlane.f32.xlu0 %v1163
      %v1165 = vpop.xlane.xlu0 %1164
      %v1166 = vsub.f32 %v1140, %v1156
      %v1167 = vsub.f32 %v1143, %v1159
      %v1168 = vsub.f32 %v1148, %v1162
      %v1169 = vsub.f32 %v1151, %v1165
      %v1170 = vmul.f32 %v1166, 1.442695
      %v1171 = vpow.pop %v1170
      %v1172 = vmul.f32 %v1167, 1.442695
      %v1173 = vpow.pop %v1172
      %v1174 = vmul.f32 %v1168, 1.442695
      %v1175 = vpow.pop %v1174
      %v1176 = vmul.f32 %v1169, 1.442695
      %v1177 = vpow.pop %v1176
      %v1178 = vsel %vm412, %v1171, 0.0
      %1179 = vadd.xlane.f32.xlu0 %v1178
      %v1180 = vpop.xlane.xlu0 %1179
      %v1181 = vsel %vm412, %v1173, 0.0
      %1182 = vadd.xlane.f32.xlu0 %v1181
      %v1183 = vpop.xlane.xlu0 %1182
      %v1184 = vsel %vm412, %v1175, 0.0
      %1185 = vadd.xlane.f32.xlu0 %v1184
      %v1186 = vpop.xlane.xlu0 %1185
      %v1187 = vsel %vm412, %v1177, 0.0
      %1188 = vadd.xlane.f32.xlu0 %v1187
      %v1189 = vpop.xlane.xlu0 %1188
      %v1190 = vrcp.pop %v1180
      %v1191 = vrcp.pop %v1183
      %v1192 = vrcp.pop %v1186
      %v1193 = vrcp.pop %v1189
      %v1194 = vmul.f32 %v1171, %v1190
      %v1195 = vmul.f32 %v1173, %v1191
      %v1196 = vmul.f32 %v1175, %v1192
      %v1197 = vmul.f32 %v1177, %v1193
      %v1198 = vpack.c.bf16 %v1195, %v1194
      %v1199 = vpack.c.bf16 %v1197, %v1196
      %1202 = vrot.lane.b32.xlu0 %v1091, 64
      %v1203 = vpop.permute.xlu0 %1202
      %1204 = vrot.lane.b32.xlu0 %v1092, 64
      %v1205 = vpop.permute.xlu0 %1204
      %v1209 = vsel %vm412, %v1198, 0
      %v1212 = vsel %vm412, %v1199, 0
      %1214 = vmatprep.subr.bf16.mxu0 0
      %1215 = vmatpush1.bf16.msra.mxu0 0
      %1216 = vmatprep.subr.bf16.mxu0 0
      %1217 = vmatpush1.bf16.msra.mxu0 0
      %1218 = vmatprep.subr.bf16.mxu0 0
      %1219 = vmatpush1.bf16.msra.mxu0 0
      %1220 = vmatprep.subr.bf16.mxu0 0
      %1221 = vmatpush1.bf16.msra.mxu0 0
      %1222 = vmatprep.subr.bf16.mxu0 0
      %1223 = vmatpush1.bf16.msra.mxu0 0
      %1224 = vmatprep.subr.bf16.mxu0 0
      %1225 = vmatpush1.bf16.msra.mxu0 0
      %1226 = vmatprep.subr.bf16.mxu0 0
      %1227 = vmatpush1.bf16.msra.mxu0 %v1205
      %1228 = vmatprep.subr.bf16.mxu0 0
      %1229 = vmatpush1.bf16.msra.mxu0 %v1203
      %1230 = vmatprep.subr.bf16.mxu0 0
      %1231 = vmatpush2.bf16.msra.mxu0 0
      %1232 = vmatprep.subr.bf16.mxu0 0
      %1233 = vmatpush2.bf16.msra.mxu0 0
      %1234 = vmatprep.subr.bf16.mxu0 0
      %1235 = vmatpush2.bf16.msra.mxu0 0
      %1236 = vmatprep.subr.bf16.mxu0 0
      %1237 = vmatpush2.bf16.msra.mxu0 0
      %1238 = vmatprep.subr.bf16.mxu0 0
      %1239 = vmatpush2.bf16.msra.mxu0 0
      %1240 = vmatprep.subr.bf16.mxu0 0
      %1241 = vmatpush2.bf16.msra.mxu0 0
      %1242 = vmatprep.subr.bf16.mxu0 0
      %1243 = vmatpush2.bf16.msra.mxu0 0
      %1244 = vmatprep.subr.bf16.mxu0 0
      %1245 = vmatpush2.bf16.msra.mxu0 0
      %1246 = vmatprep.mubr.bf16.mxu0 0
      %1247 = vmatmul.mubr.bf16.gmra.mxu0 %v1209
      %v1248 = vpop.f32.mrf.mxu0
      %v1249 = vadd.f32 0.0, %v1248
      %v1250 = vpop.f32.mrf.mxu0
      %v1251 = vpop.f32.mrf.mxu0
      %v1252 = vadd.f32 0.0, %v1251
      %v1253 = vpop.f32.mrf.mxu0
      %1254 = vmatprep.mubr.bf16.mxu0 0
      %1255 = vmatmul.mubr.bf16.gmra.mxu0 %v1212
      %v1256 = vpop.f32.mrf.mxu0
      %v1257 = vadd.f32 0.0, %v1256
      %v1258 = vpop.f32.mrf.mxu0
      %v1259 = vpop.f32.mrf.mxu0
      %v1260 = vadd.f32 0.0, %v1259
      %v1261 = vpop.f32.mrf.mxu0
      %1262 = vdwg.mxu0
      %v1263 = vadd.f32 %v1064, %v1249
      %v1264 = vadd.f32 %v1065, %v1252
      %v1265 = vadd.f32 %v1066, %v1257
      %v1266 = vadd.f32 %v1067, %v1260
      %v1267 = vpack.c.bf16 %v1264, %v1263
      %v1268 = vpack.c.bf16 %v1266, %v1265
      %s1269 = smul.addr %s385, 4
      %s1270 = scalar_lea.vmem %s5, %s1269
      %v1271 = vld [vmem:[%s1270] sm:$0xf]
      %v1272 = vld [vmem:[%s1270 + $0x4] sm:$0xf]
      %v1273 = vld [vmem:[%s1270 + $0x8] sm:$0xf]
      %v1274 = vld [vmem:[%s1270 + $0xc] sm:$0xf]
      %s1275 = scalar_lea.vmem %s6, %s25
      %v1276 = vld [vmem:[%s1275] sm:$0x1]
      %v1278 = vlaneseq
      %v1279 = vshrl.u32 %v1278, 7
      %v1280 = vsub.s32 0, %v1279
      %v1281 = vrot.slane %v1276, %v1280
      %v1287 = vunpack.c.l.b16 %v1271
      %v1288 = vunpack.c.l.b16 %v1272
      %v1289 = vunpack.c.l.b16 %v1273
      %v1290 = vunpack.c.l.b16 %v1274
      %v1291 = vpack.c.b16 %v1288, %v1287
      %v1292 = vpack.c.b16 %v1290, %v1289
      %v1296 = vsel %vm412, %v1267, 0
      %v1299 = vsel %vm412, %v1268, 0
      %1301 = vmatprep.subr.bf16.mxu0 0
      %1302 = vmatpush1.bf16.msra.mxu0 0
      %1303 = vmatprep.subr.bf16.mxu0 0
      %1304 = vmatpush1.bf16.msra.mxu0 0
      %1305 = vmatprep.subr.bf16.mxu0 0
      %1306 = vmatpush1.bf16.msra.mxu0 0
      %1307 = vmatprep.subr.bf16.mxu0 0
      %1308 = vmatpush1.bf16.msra.mxu0 0
      %1309 = vmatprep.subr.bf16.mxu0 0
      %1310 = vmatpush1.bf16.msra.mxu0 0
      %1311 = vmatprep.subr.bf16.mxu0 0
      %1312 = vmatpush1.bf16.msra.mxu0 0
      %1313 = vmatprep.subr.bf16.mxu0 0
      %1314 = vmatpush1.bf16.msra.mxu0 %v1292
      %1315 = vmatprep.subr.bf16.mxu0 0
      %1316 = vmatpush1.bf16.msra.mxu0 %v1291
      %1317 = vmatprep.subr.bf16.mxu0 0
      %1318 = vmatpush2.bf16.msra.mxu0 0
      %1319 = vmatprep.subr.bf16.mxu0 0
      %1320 = vmatpush2.bf16.msra.mxu0 0
      %1321 = vmatprep.subr.bf16.mxu0 0
      %1322 = vmatpush2.bf16.msra.mxu0 0
      %1323 = vmatprep.subr.bf16.mxu0 0
      %1324 = vmatpush2.bf16.msra.mxu0 0
      %1325 = vmatprep.subr.bf16.mxu0 0
      %1326 = vmatpush2.bf16.msra.mxu0 0
      %1327 = vmatprep.subr.bf16.mxu0 0
      %1328 = vmatpush2.bf16.msra.mxu0 0
      %1329 = vmatprep.subr.bf16.mxu0 0
      %1330 = vmatpush2.bf16.msra.mxu0 0
      %1331 = vmatprep.subr.bf16.mxu0 0
      %1332 = vmatpush2.bf16.msra.mxu0 0
      %1333 = vmatprep.mubr.bf16.mxu0 0
      %1334 = vmatmul.mubr.bf16.gmra.mxu0 %v1296
      %v1335 = vpop.f32.mrf.mxu0
      %v1336 = vadd.f32 %v1281, %v1335
      %v1337 = vpop.f32.mrf.mxu0
      %v1338 = vpop.f32.mrf.mxu0
      %v1339 = vadd.f32 %v1281, %v1338
      %v1340 = vpop.f32.mrf.mxu0
      %1341 = vmatprep.mubr.bf16.mxu0 0
      %1342 = vmatmul.mubr.bf16.gmra.mxu0 %v1299
      %v1343 = vpop.f32.mrf.mxu0
      %v1344 = vadd.f32 %v1281, %v1343
      %v1345 = vpop.f32.mrf.mxu0
      %v1346 = vpop.f32.mrf.mxu0
      %v1347 = vadd.f32 %v1281, %v1346
      %v1348 = vpop.f32.mrf.mxu0
      %1349 = vdwg.mxu0
      %v1350 = vadd.f32 %v379, %v1336
      %v1351 = vadd.f32 %v380, %v1339
      %v1352 = vadd.f32 %v381, %v1344
      %v1353 = vadd.f32 %v382, %v1347
      %v1354 = vsel %vm412, %v1350, 0.0
      %1355 = vadd.xlane.f32.xlu0 %v1354
      %v1356 = vpop.xlane.xlu0 %1355
      %v1357 = vsel %vm412, %v1351, 0.0
      %1358 = vadd.xlane.f32.xlu0 %v1357
      %v1359 = vpop.xlane.xlu0 %1358
      %v1360 = vsel %vm412, %v1352, 0.0
      %1361 = vadd.xlane.f32.xlu0 %v1360
      %v1362 = vpop.xlane.xlu0 %1361
      %v1363 = vsel %vm412, %v1353, 0.0
      %1364 = vadd.xlane.f32.xlu0 %v1363
      %v1365 = vpop.xlane.xlu0 %1364
      %v1366 = vrcp.pop 32.0
      %v1367 = vmul.f32 %v1356, %v1366
      %v1368 = vmul.f32 %v1359, %v1366
      %v1369 = vmul.f32 %v1362, %v1366
      %v1370 = vmul.f32 %v1365, %v1366
      %v1371 = vsub.f32 %v1350, %v1367
      %v1372 = vsub.f32 %v1351, %v1368
      %v1373 = vsub.f32 %v1352, %v1369
      %v1374 = vsub.f32 %v1353, %v1370
      %v1375 = vmul.f32 %v1371, %v1371
      %v1376 = vmul.f32 %v1372, %v1372
      %v1377 = vmul.f32 %v1373, %v1373
      %v1378 = vmul.f32 %v1374, %v1374
      %v1379 = vsel %vm412, %v1375, 0.0
      %1380 = vadd.xlane.f32.xlu0 %v1379
      %v1381 = vpop.xlane.xlu0 %1380
      %v1382 = vsel %vm412, %v1376, 0.0
      %1383 = vadd.xlane.f32.xlu0 %v1382
      %v1384 = vpop.xlane.xlu0 %1383
      %v1385 = vsel %vm412, %v1377, 0.0
      %1386 = vadd.xlane.f32.xlu0 %v1385
      %v1387 = vpop.xlane.xlu0 %1386
      %v1388 = vsel %vm412, %v1378, 0.0
      %1389 = vadd.xlane.f32.xlu0 %v1388
      %v1390 = vpop.xlane.xlu0 %1389
      %v1391 = vmul.f32 %v1381, %v1366
      %v1392 = vmul.f32 %v1384, %v1366
      %v1393 = vmul.f32 %v1387, %v1366
      %v1394 = vmul.f32 %v1390, %v1366
      %v1395 = vadd.f32 %v1391, 1e-05
      %v1396 = vadd.f32 %v1392, 1e-05
      %v1397 = vadd.f32 %v1393, 1e-05
      %v1398 = vadd.f32 %v1394, 1e-05
      %v1399 = vrsqrt.pop %v1395
      %v1400 = vrsqrt.pop %v1396
      %v1401 = vrsqrt.pop %v1397
      %v1402 = vrsqrt.pop %v1398
      %v1403 = vmul.f32 %v1371, %v1399
      %v1404 = vmul.f32 %v1372, %v1400
      %v1405 = vmul.f32 %v1373, %v1401
      %v1406 = vmul.f32 %v1374, %v1402
      %s1407 = scalar_lea.vmem %s7, %s25
      %v1408 = vld [vmem:[%s1407] sm:$0x1]
      %v1410 = vlaneseq
      %v1411 = vshrl.u32 %v1410, 7
      %v1412 = vsub.s32 0, %v1411
      %v1413 = vrot.slane %v1408, %v1412
      %v1415 = vmul.f32 %v1403, %v1413
      %v1416 = vmul.f32 %v1404, %v1413
      %v1417 = vmul.f32 %v1405, %v1413
      %v1418 = vmul.f32 %v1406, %v1413
      %s1419 = scalar_lea.vmem %s8, %s25
      %v1420 = vld [vmem:[%s1419] sm:$0x1]
      %v1422 = vlaneseq
      %v1423 = vshrl.u32 %v1422, 7
      %v1424 = vsub.s32 0, %v1423
      %v1425 = vrot.slane %v1420, %v1424
      %v1427 = vadd.f32 %v1415, %v1425
      %v1428 = vadd.f32 %v1416, %v1425
      %v1429 = vadd.f32 %v1417, %v1425
      %v1430 = vadd.f32 %v1418, %v1425
      %1431 = vst.msk [vmem:[#allocation2] sm:$0xff] %vm412, %v1427
      %1432 = vst.msk [vmem:[#allocation2 + $0x8] sm:$0xff] %vm412, %v1428
      %1433 = vst.msk [vmem:[#allocation2 + $0x10] sm:$0xff] %vm412, %v1429
      %1434 = vst.msk [vmem:[#allocation2 + $0x18] sm:$0xff] %vm412, %v1430
      %p1435 = scmp.eq.s32.totalorder %s25, 1
      // Predicated region
      $region61: #{se_forward.1} parent=55 // pred_check
        %p1436 = pneg %p1435
      $region62: #{se_forward.1} parent=55 // pred_check_branch
        %1438 = sbr.rel (%p1436) target = $region64
      $region63: #{se_forward.1} parent=55 // pred_region
        %1439 = vst.msk [vmem:[%s364] sm:$0xff] %vm412, %v1427
        %1440 = vst.msk [vmem:[%s364 + $0x8] sm:$0xff] %vm412, %v1428
        %1441 = vst.msk [vmem:[%s364 + $0x10] sm:$0xff] %vm412, %v1429
        %1442 = vst.msk [vmem:[%s364 + $0x18] sm:$0xff] %vm412, %v1430
      $region64: #{se_forward.1} parent=55 // pred_fallthru
        _
      %p1443 = scmp.lt.s32.totalorder %s24, 1
      %s1444 = scalar_select %p1443, %s24, 1
      %s1445 = smul.addr %s1444, 4
      %s1446 = smul.addr %s1445, 8
      %s1447 = scalar_lea.vmem %s9, %s1446
      // Predicated region
      $region65: #{se_forward.1} parent=55 // pred_check
        %p1448 = pneg %p249
      $region66: #{se_forward.1} parent=55 // pred_check_branch
        %1450 = sbr.rel (%p1448) target = $region68
      $region67: #{se_forward.1} parent=55 // pred_region
        _
      $region68: #{se_forward.1} parent=55 // pred_fallthru
        _
    $region56: #{se_forward.1} parent=5 // pred_fallthru
      _
    %p1451 = scmp.le.s32.totalorder 2, %s15
    // Predicated region
    $region69: #{se_forward.1} parent=5 // pred_check
      %p1452 = pneg %p1451
    $region70: #{se_forward.1} parent=5 // pred_check_branch
      %1454 = sbr.rel (%p1452) target = $region72
    $region71: #{se_forward.1} parent=5 // pred_region
      %s1455 = ssub.s32 %s15, 2
      // Predicated region
      $region73: #{se_forward.1} parent=71 // pred_check
        %p1456 = pneg %p255
      $region74: #{se_forward.1} parent=71 // pred_check_branch
        %1458 = sbr.rel (%p1456) target = $region76
      $region75: #{se_forward.1} parent=71 // pred_region
        %p1459 = scmp.lt.s32.totalorder %s26, 1
        %s1460 = scalar_select %p1459, %s26, 1
        %s1461 = smul.addr %s1460, 4
        %s1462 = smul.addr %s1461, 8
        %s1463 = scalar_lea.vmem %s9, %s1462
      $region76: #{se_forward.1} parent=71 // pred_fallthru
        _
    $region72: #{se_forward.1} parent=5 // pred_fallthru
      _
  $region6: #{se_forward.1} parent=0 // loop_footer
    %s19 = sadd.s32 1, %s15
  $region7: #{se_forward.1} parent=0 // loop_footer_branch
    %14 = sbr.rel target = $region3
  $region8: #{se_forward.1} parent=0 // loop_exit
    _

</llo_original>
